<compile_context>
chip_gen: v7x
topology: tpu7x:2x2x1
jax: 0.10.0
libtpu: 0.0.40
codegen_flags: <defaults>
</compile_context>

<pallas_src>
import functools

import jax
import jax.numpy as jnp
import numpy as np
from jax.experimental import pallas as pl
from jax.experimental.pallas import tpu as pltpu

LATENT_DIM = 2
HIDDEN_DIM = 500
OUTPUT_DIM = 784  # 28x28 MNIST reconstruction

# 128-aligned padded feature dims (lane-dense layout).
HIDDEN_PAD = 512   # 4 * 128
OUTPUT_PAD = 896   # 7 * 128

# Row layout of the packed small-operand array: shape (8, OUTPUT_PAD) f32.
_W1_ROW0, _W1_ROW1, _B1_ROW, _B2_ROW, _B3_ROW = 0, 1, 2, 3, 4


def decoder_kernel(z_ref, small_ref, w2_ref, w3_ref, out_ref):
    z = z_ref[...]  # (tb, 2) f32

    # ---- fc1 + relu : K=2 contraction on the VPU (two broadcast FMAs). ----
    h = (z[:, 0:1] * small_ref[_W1_ROW0:_W1_ROW0 + 1, 0:HIDDEN_PAD]
         + z[:, 1:2] * small_ref[_W1_ROW1:_W1_ROW1 + 1, 0:HIDDEN_PAD]
         + small_ref[_B1_ROW:_B1_ROW + 1, 0:HIDDEN_PAD])
    h = jnp.maximum(h, 0.0)                                     # (tb, Hp) f32

    # ---- fc2 + relu : bf16 MXU matmul, f32 accumulate ----
    h = jnp.dot(h.astype(jnp.bfloat16), w2_ref[...],
                preferred_element_type=jnp.float32)
    h = jnp.maximum(h + small_ref[_B2_ROW:_B2_ROW + 1, 0:HIDDEN_PAD], 0.0)

    # ---- fc_out + sigmoid : bf16 MXU matmul, f32 accumulate ----
    logits = jnp.dot(h.astype(jnp.bfloat16), w3_ref[...],
                     preferred_element_type=jnp.float32)
    out_ref[...] = jax.nn.sigmoid(logits + small_ref[_B3_ROW:_B3_ROW + 1, :])


def _round_up(x, m):
    return (x + m - 1) // m * m


def _cost_estimate(rows):
    flops = 2 * rows * (LATENT_DIM * HIDDEN_PAD
                        + HIDDEN_PAD * HIDDEN_PAD
                        + HIDDEN_PAD * OUTPUT_PAD)
    transcendentals = rows * OUTPUT_PAD  # sigmoid -> exp on the EUP
    bytes_accessed = (
        rows * LATENT_DIM * 4                 # z
        + 8 * OUTPUT_PAD * 4                  # packed w1/b1/b2/b3 (f32)
        + HIDDEN_PAD * HIDDEN_PAD * 2         # w2 (bf16), fetched once
        + HIDDEN_PAD * OUTPUT_PAD * 2         # w3 (bf16), fetched once
        + rows * OUTPUT_PAD * 4               # output
    )
    return pl.CostEstimate(flops=flops,
                           transcendentals=transcendentals,
                           bytes_accessed=bytes_accessed)


@functools.partial(jax.jit, static_argnames=("tile_b", "return_padded"))
def decoder_forward(z, params, *, tile_b=128, return_padded=False):
    small, w2, w3 = params
    B = z.shape[0]
    # Batch tile: multiple of 16 (full bf16 sublane tiles), capped at tile_b.
    tb = min(tile_b, _round_up(B, 16))
    Bp = _round_up(B, tb)
    if Bp != B:
        z = jnp.pad(z, ((0, Bp - B), (0, 0)))
    num_tiles = Bp // tb

    out_padded = pl.pallas_call(
        decoder_kernel,
        out_shape=jax.ShapeDtypeStruct((Bp, OUTPUT_PAD), jnp.float32),
        grid=(num_tiles,),
        in_specs=[
            # Activations walk the batch tiles.
            pl.BlockSpec((tb, LATENT_DIM), lambda i: (i, 0)),
            # Weights: constant block index -> DMA'd once, VMEM-resident.
            pl.BlockSpec((8, OUTPUT_PAD), lambda i: (0, 0)),
            pl.BlockSpec((HIDDEN_PAD, HIDDEN_PAD), lambda i: (0, 0)),
            pl.BlockSpec((HIDDEN_PAD, OUTPUT_PAD), lambda i: (0, 0)),
        ],
        out_specs=pl.BlockSpec((tb, OUTPUT_PAD), lambda i: (i, 0)),
        compiler_params=pltpu.CompilerParams(
            # Only shard across TensorCores when there is actually a grid to
            # split (avoids per-core weight DMA at tiny batch sizes).
            dimension_semantics=(("parallel",) if num_tiles > 1
                                 else ("arbitrary",)),
        ),
        cost_estimate=_cost_estimate(Bp),
    )(z, small, w2, w3)

    if return_padded:
        # Padded layout: rows >= B are garbage-from-zero-padding, cols
        # 784..895 hold sigmoid(0)=0.5.  Consumers must slice themselves.
        return out_padded
    return out_padded[:B, :OUTPUT_DIM]


def pack_params(w1, b1, w2, b2, w3, b3):
    """Zero-pad to 128-aligned shapes, pack the small operands into one f32
    array, and quantize w2/w3 to bf16."""
    small = jnp.zeros((8, OUTPUT_PAD), jnp.float32)
    small = small.at[_W1_ROW0:_W1_ROW1 + 1, :HIDDEN_DIM].set(w1)
    small = small.at[_B1_ROW, :HIDDEN_DIM].set(b1)
    small = small.at[_B2_ROW, :HIDDEN_DIM].set(b2)
    small = small.at[_B3_ROW, :OUTPUT_DIM].set(b3)

    w2p = (jnp.zeros((HIDDEN_PAD, HIDDEN_PAD), jnp.float32)
           .at[:HIDDEN_DIM, :HIDDEN_DIM].set(w2).astype(jnp.bfloat16))
    w3p = (jnp.zeros((HIDDEN_PAD, OUTPUT_PAD), jnp.float32)
           .at[:HIDDEN_DIM, :OUTPUT_DIM].set(w3).astype(jnp.bfloat16))
    return (small, w2p, w3p)


def init_params(key):
    """PyTorch nn.Linear default init (U(-1/sqrt(fan_in), +1/sqrt(fan_in)))."""
    ks = jax.random.split(key, 6)

    def linear(kw, kb, fan_in, fan_out):
        bound = 1.0 / np.sqrt(fan_in)
        w = jax.random.uniform(kw, (fan_in, fan_out), jnp.float32, -bound, bound)
        b = jax.random.uniform(kb, (fan_out,), jnp.float32, -bound, bound)
        return w, b

    w1, b1 = linear(ks[0], ks[1], LATENT_DIM, HIDDEN_DIM)
    w2, b2 = linear(ks[2], ks[3], HIDDEN_DIM, HIDDEN_DIM)
    w3, b3 = linear(ks[4], ks[5], HIDDEN_DIM, OUTPUT_DIM)
    return pack_params(w1, b1, w2, b2, w3, b3)


def decoder_reference(z, params):
    """Pure-JAX reference mirroring the kernel's dtypes (bf16 w2/w3, f32
    accumulation and elementwise math).  Note: bf16 weights introduce ~1e-2
    scale error vs. a full-f32 PyTorch Decoder — documented precision choice."""
    small, w2, w3 = params
    w1 = small[_W1_ROW0:_W1_ROW1 + 1, :HIDDEN_PAD]
    b1 = small[_B1_ROW, :HIDDEN_PAD]
    b2 = small[_B2_ROW, :HIDDEN_PAD]
    b3 = small[_B3_ROW, :]
    h = jnp.maximum(z @ w1 + b1, 0.0)
    h = jnp.dot(h.astype(jnp.bfloat16), w2, preferred_element_type=jnp.float32)
    h = jnp.maximum(h + b2, 0.0)
    logits = jnp.dot(h.astype(jnp.bfloat16), w3, preferred_element_type=jnp.float32)
    return jax.nn.sigmoid(logits + b3)[:, :OUTPUT_DIM]


if __name__ == "__main__":
    key = jax.random.PRNGKey(0)
    k_params, k_z = jax.random.split(key)
    params = init_params(k_params)

    BATCH = 8  # small test batch; kernel pads to a 16-row tile internally
    z = jax.random.normal(k_z, (BATCH, LATENT_DIM), jnp.float32)

    out = jax.block_until_ready(decoder_forward(z, params))
    assert out.shape == (BATCH, OUTPUT_DIM)

    ref = jax.block_until_ready(decoder_reference(z, params))
    np.testing.assert_allclose(np.asarray(out), np.asarray(ref),
                               rtol=2e-3, atol=2e-3)

    print("KERNEL_OK")
</pallas_src>

<mosaic_0001>
module attributes {stable_mosaic.version = 11 : i64} {
  func.func @decoder_kernel(%arg0: i32, %arg1: memref<16x2xf32, #tpu.memory_space<vmem>>, %arg2: memref<8x896xf32, #tpu.memory_space<vmem>>, %arg3: memref<512x512xbf16, #tpu.memory_space<vmem>>, %arg4: memref<512x896xbf16, #tpu.memory_space<vmem>>, %arg5: memref<16x896xf32, #tpu.memory_space<vmem>>) attributes {dimension_semantics = [#tpu.dimension_semantics<arbitrary>], iteration_bounds = array<i64: 1>, scalar_prefetch = 0 : i64, scratch_operands = 0 : i64, tpu.core_type = #tpu.core_type<tc>, window_params = [{transform_indices = @transform_0, window_bounds = array<i64: 16, 2>}, {pipeline_mode = #tpu.pipeline_mode<synchronous>, transform_indices = @transform_1, window_bounds = array<i64: 8, 896>}, {pipeline_mode = #tpu.pipeline_mode<synchronous>, transform_indices = @transform_2, window_bounds = array<i64: 512, 512>}, {pipeline_mode = #tpu.pipeline_mode<synchronous>, transform_indices = @transform_3, window_bounds = array<i64: 512, 896>}, {transform_indices = @transform_4, window_bounds = array<i64: 16, 896>}]} {
    %c0 = arith.constant 0 : index
    %c0_0 = arith.constant 0 : index
    %0 = vector.load %arg1[%c0, %c0_0] : memref<16x2xf32, #tpu.memory_space<vmem>>, vector<16x2xf32>
    %1 = vector.extract_strided_slice %0 {offsets = [0, 0], sizes = [16, 1], strides = [1, 1]} : vector<16x2xf32> to vector<16x1xf32>
    %c0_1 = arith.constant 0 : index
    %c0_2 = arith.constant 0 : index
    %2 = vector.load %arg2[%c0_1, %c0_2] : memref<8x896xf32, #tpu.memory_space<vmem>>, vector<1x512xf32>
    %3 = vector.broadcast %1 : vector<16x1xf32> to vector<16x512xf32>
    %4 = vector.broadcast %2 : vector<1x512xf32> to vector<16x512xf32>
    %5 = arith.mulf %3, %4 : vector<16x512xf32>
    %6 = vector.extract_strided_slice %0 {offsets = [0, 1], sizes = [16, 1], strides = [1, 1]} : vector<16x2xf32> to vector<16x1xf32>
    %c1 = arith.constant 1 : index
    %c0_3 = arith.constant 0 : index
    %7 = vector.load %arg2[%c1, %c0_3] : memref<8x896xf32, #tpu.memory_space<vmem>>, vector<1x512xf32>
    %8 = vector.broadcast %6 : vector<16x1xf32> to vector<16x512xf32>
    %9 = vector.broadcast %7 : vector<1x512xf32> to vector<16x512xf32>
    %10 = arith.mulf %8, %9 : vector<16x512xf32>
    %11 = arith.addf %5, %10 : vector<16x512xf32>
    %c2 = arith.constant 2 : index
    %c0_4 = arith.constant 0 : index
    %12 = vector.load %arg2[%c2, %c0_4] : memref<8x896xf32, #tpu.memory_space<vmem>>, vector<1x512xf32>
    %13 = vector.broadcast %12 : vector<1x512xf32> to vector<16x512xf32>
    %14 = arith.addf %11, %13 : vector<16x512xf32>
    %cst = arith.constant 0.000000e+00 : f32
    %15 = vector.broadcast %cst : f32 to vector<16x512xf32>
    %16 = arith.maximumf %14, %15 : vector<16x512xf32>
    %17 = arith.truncf %16 : vector<16x512xf32> to vector<16x512xbf16>
    %c0_5 = arith.constant 0 : index
    %c0_6 = arith.constant 0 : index
    %18 = vector.load %arg3[%c0_5, %c0_6] : memref<512x512xbf16, #tpu.memory_space<vmem>>, vector<512x512xbf16>
    %cst_7 = arith.constant dense<0.000000e+00> : vector<16x512xf32>
    %19 = tpu.matmul %17, %18, %cst_7 {dimension_numbers = #tpu.dot_dimension_numbers<[1], [0], [0], [1], [0, 0, 1, 1], [], []>} : vector<16x512xbf16>, vector<512x512xbf16>, vector<16x512xf32> -> vector<16x512xf32>
    %c3 = arith.constant 3 : index
    %c0_8 = arith.constant 0 : index
    %20 = vector.load %arg2[%c3, %c0_8] : memref<8x896xf32, #tpu.memory_space<vmem>>, vector<1x512xf32>
    %21 = vector.broadcast %20 : vector<1x512xf32> to vector<16x512xf32>
    %22 = arith.addf %19, %21 : vector<16x512xf32>
    %cst_9 = arith.constant 0.000000e+00 : f32
    %23 = vector.broadcast %cst_9 : f32 to vector<16x512xf32>
    %24 = arith.maximumf %22, %23 : vector<16x512xf32>
    %25 = arith.truncf %24 : vector<16x512xf32> to vector<16x512xbf16>
    %c0_10 = arith.constant 0 : index
    %c0_11 = arith.constant 0 : index
    %26 = vector.load %arg4[%c0_10, %c0_11] : memref<512x896xbf16, #tpu.memory_space<vmem>>, vector<512x896xbf16>
    %cst_12 = arith.constant dense<0.000000e+00> : vector<16x896xf32>
    %27 = tpu.matmul %25, %26, %cst_12 {dimension_numbers = #tpu.dot_dimension_numbers<[1], [0], [0], [1], [0, 0, 1, 1], [], []>} : vector<16x512xbf16>, vector<512x896xbf16>, vector<16x896xf32> -> vector<16x896xf32>
    %c4 = arith.constant 4 : index
    %c0_13 = arith.constant 0 : index
    %28 = vector.load %arg2[%c4, %c0_13] : memref<8x896xf32, #tpu.memory_space<vmem>>, vector<1x896xf32>
    %29 = vector.broadcast %28 : vector<1x896xf32> to vector<16x896xf32>
    %30 = arith.addf %27, %29 : vector<16x896xf32>
    %31 = arith.negf %30 : vector<16x896xf32>
    %32 = math.exp %31 : vector<16x896xf32>
    %cst_14 = arith.constant 1.000000e+00 : f32
    %33 = vector.broadcast %cst_14 : f32 to vector<16x896xf32>
    %34 = arith.addf %33, %32 : vector<16x896xf32>
    %35 = arith.divf %33, %34 : vector<16x896xf32>
    %c0_15 = arith.constant 0 : index
    %c0_16 = arith.constant 0 : index
    %36 = vector.load %arg5[%c0_15, %c0_16] : memref<16x896xf32, #tpu.memory_space<vmem>>, vector<16x896xf32>
    tpu.vector_store %arg5[%c0_15, %c0_16], %35 {strides = array<i32>} : memref<16x896xf32, #tpu.memory_space<vmem>>, vector<16x896xf32>,
    return
  }
  func.func @transform_0(%arg0: i32) -> (i32, i32) {
    %c0_i32 = arith.constant 0 : i32
    %c0_i32_0 = arith.constant 0 : i32
    return %arg0, %c0_i32 : i32, i32
  }
  func.func @transform_1(%arg0: i32) -> (i32, i32) {
    %c0_i32 = arith.constant 0 : i32
    %c0_i32_0 = arith.constant 0 : i32
    %c0_i32_1 = arith.constant 0 : i32
    return %c0_i32, %c0_i32_0 : i32, i32
  }
  func.func @transform_2(%arg0: i32) -> (i32, i32) {
    %c0_i32 = arith.constant 0 : i32
    %c0_i32_0 = arith.constant 0 : i32
    %c0_i32_1 = arith.constant 0 : i32
    return %c0_i32, %c0_i32_0 : i32, i32
  }
  func.func @transform_3(%arg0: i32) -> (i32, i32) {
    %c0_i32 = arith.constant 0 : i32
    %c0_i32_0 = arith.constant 0 : i32
    %c0_i32_1 = arith.constant 0 : i32
    return %c0_i32, %c0_i32_0 : i32, i32
  }
  func.func @transform_4(%arg0: i32) -> (i32, i32) {
    %c0_i32 = arith.constant 0 : i32
    %c0_i32_0 = arith.constant 0 : i32
    return %arg0, %c0_i32 : i32, i32
  }
}

</mosaic_0001>

<llo_original>
// kernel: decoder_forward.1
$region0: #{decoder_forward.1}
  #allocation0 [shape = 'u32[]', space=smem, size = 0x4, offset = 0x4, fixed_abs, tag = 'smem constant byte address 0x4 - core index']
  #allocation1 [shape = 'u32[144,128]{1,0:T(1,128)}', space=vmem, size = 0x12000, scoped, tag = 'internal scratch']
  %s0 = inlined_call_operand.vmem [shape: f32[16,2], index: 0, kind: input, shape index: {}]
  %s1 = inlined_call_operand.hbm [shape: f32[8,896], index: 1, kind: input, shape index: {}]
  %s2 = inlined_call_operand.hbm [shape: bf16[512,512], index: 2, kind: input, shape index: {}]
  %s3 = inlined_call_operand.hbm [shape: bf16[512,896], index: 3, kind: input, shape index: {}]
  %s4 = inlined_call_operand.vmem [shape: f32[16,896], index: 4, kind: output, shape index: {}]
  %s5 = sld [smem:[#allocation0]]
  $region38: #{decoder_forward.1} parent=0
    _
  %s7 = ssub.s32 1, %s5
  %s8 = scalar_select 0, %s7, %s5
  $region1: #{decoder_forward.1} parent=0
    #allocation2 [shape = 'u8[28672]{0}', space=vmem, size = 0x7000, scoped, tag = 'input window, operand 1, single buffered']
    #allocation3 [shape = 's32[1]{0}', space=sflag, size = 0x4, scoped, tag = 'scoped memory for decoder_forward.1']
    #allocation4 [shape = 'u8[524288]{0}', space=vmem, size = 0x80000, scoped, tag = 'input window, operand 2, single buffered']
    #allocation5 [shape = 's32[1]{0}', space=sflag, size = 0x4, scoped, tag = 'scoped memory for decoder_forward.1']
    #allocation6 [shape = 'u8[917504]{0}', space=vmem, size = 0xe0000, scoped, tag = 'input window, operand 3, single buffered']
    %9 = vsyncpa [#allocation3], 0
    %10 = vsyncpa [#allocation5], 0
    // Predicated region
    $region2: #{decoder_forward.1} parent=1 // pred_check
      _
    $region3: #{decoder_forward.1} parent=1 // pred_check_branch
      %12 = sbr.rel (0) target = $region5
    $region4: #{decoder_forward.1} parent=1 // pred_region
      _
    $region5: #{decoder_forward.1} parent=1 // pred_fallthru
      _
    // Predicated region
    $region6: #{decoder_forward.1} parent=1 // pred_check
      _
    $region7: #{decoder_forward.1} parent=1 // pred_check_branch
      %14 = sbr.rel (0) target = $region9
    $region8: #{decoder_forward.1} parent=1 // pred_region
      %s16 = ssub.s32 896, 896
      %17 = vsyncadd [#allocation3], %s16
      %s19 = sshll.u32 [#allocation2], 4
      %s20 = int_to_ptr.vmem [resolvable:$true] %s19
      %22 = dma.hbm_to_vmem [thread:$0]  %s1, 896, %s20, [#allocation3]
    $region9: #{decoder_forward.1} parent=1 // pred_fallthru
      _
    // Predicated region
    $region10: #{decoder_forward.1} parent=1 // pred_check
      _
    $region11: #{decoder_forward.1} parent=1 // pred_check_branch
      %24 = sbr.rel (0) target = $region13
    $region12: #{decoder_forward.1} parent=1 // pred_region
      %s26 = ssub.s32 16384, 16384
      %27 = vsyncadd [#allocation5], %s26
      %s28 = sshll.u32 [#allocation4], 4
      %s29 = int_to_ptr.vmem [resolvable:$true] %s28
      %34 = dma.hbm_to_vmem [thread:$0]  %s2, 16384, %s29, [#allocation5], 256, 256, 16
    $region13: #{decoder_forward.1} parent=1 // pred_fallthru
      _
    // Predicated region
    $region14: #{decoder_forward.1} parent=1 // pred_check
      _
    $region15: #{decoder_forward.1} parent=1 // pred_check_branch
      %36 = sbr.rel (0) target = $region17
    $region16: #{decoder_forward.1} parent=1 // pred_region
      %s38 = ssub.s32 28672, 28672
      %39 = vsyncadd [#allocation5], %s38
      %s40 = sshll.u32 [#allocation6], 4
      %s41 = int_to_ptr.vmem [resolvable:$true] %s40
      %46 = dma.hbm_to_vmem [thread:$0]  %s3, 28672, %s41, [#allocation5], 448, 448, 28
    $region17: #{decoder_forward.1} parent=1 // pred_fallthru
      _
    // Predicated region
    $region18: #{decoder_forward.1} parent=1 // pred_check
      _
    $region19: #{decoder_forward.1} parent=1 // pred_check_branch
      %48 = sbr.rel (0) target = $region21
    $region20: #{decoder_forward.1} parent=1 // pred_region
      %49 = dma.done [#allocation3], 896
    $region21: #{decoder_forward.1} parent=1 // pred_fallthru
      _
    // Predicated region
    $region22: #{decoder_forward.1} parent=1 // pred_check
      _
    $region23: #{decoder_forward.1} parent=1 // pred_check_branch
      %51 = sbr.rel (0) target = $region25
    $region24: #{decoder_forward.1} parent=1 // pred_region
      %52 = dma.done [#allocation5], 16384
    $region25: #{decoder_forward.1} parent=1 // pred_fallthru
      _
    // Predicated region
    $region26: #{decoder_forward.1} parent=1 // pred_check
      _
    $region27: #{decoder_forward.1} parent=1 // pred_check_branch
      %54 = sbr.rel (0) target = $region29
    $region28: #{decoder_forward.1} parent=1 // pred_region
      %55 = dma.done [#allocation5], 28672
    $region29: #{decoder_forward.1} parent=1 // pred_fallthru
      _
    %v57 = vld [vmem:[%s0] sm:$0xff]
    %v58 = vld [vmem:[%s0 + $0x8] sm:$0xff]
    %v59 = vld [vmem:[#allocation2] ss:$8 sm:$0xf]
    %61 = vset.pattern.permute.xlu0 0
    %62 = vperm.xlu0 %61, %v57
    %v63 = vpop.permute.xlu0 %62
    %66 = vset.pattern.permute.xlu0 0
    %67 = vperm.xlu0 %66, %v58
    %v68 = vpop.permute.xlu0 %67
    %v71 = vlaneseq
    %v72 = vshrl.u32 %v71, 7
    %v73 = vsub.s32 0, %v72
    %v74 = vrot.slane %v59, %v73
    %v75 = vlaneseq
    %v76 = vshrl.u32 %v75, 7
    %v77 = vsub.s32 1, %v76
    %v78 = vrot.slane %v59, %v77
    %v79 = vlaneseq
    %v80 = vshrl.u32 %v79, 7
    %v81 = vsub.s32 2, %v80
    %v82 = vrot.slane %v59, %v81
    %v83 = vlaneseq
    %v84 = vshrl.u32 %v83, 7
    %v85 = vsub.s32 3, %v84
    %v86 = vrot.slane %v59, %v85
    %v91 = vmul.f32 %v63, %v74
    %v92 = vmul.f32 %v63, %v78
    %v93 = vmul.f32 %v63, %v82
    %v94 = vmul.f32 %v63, %v86
    %v95 = vmul.f32 %v68, %v74
    %v96 = vmul.f32 %v68, %v78
    %v97 = vmul.f32 %v68, %v82
    %v98 = vmul.f32 %v68, %v86
    %s99 = scalar_lea.vmem [#allocation2], 1
    %v100 = vld [vmem:[%s99] ss:$8 sm:$0xf]
    %101 = vset.pattern.permute.xlu0 1
    %102 = vperm.xlu0 %101, %v57
    %v103 = vpop.permute.xlu0 %102
    %105 = vset.pattern.permute.xlu0 1
    %106 = vperm.xlu0 %105, %v58
    %v107 = vpop.permute.xlu0 %106
    %v110 = vlaneseq
    %v111 = vshrl.u32 %v110, 7
    %v112 = vsub.s32 0, %v111
    %v113 = vrot.slane %v100, %v112
    %v114 = vlaneseq
    %v115 = vshrl.u32 %v114, 7
    %v116 = vsub.s32 1, %v115
    %v117 = vrot.slane %v100, %v116
    %v118 = vlaneseq
    %v119 = vshrl.u32 %v118, 7
    %v120 = vsub.s32 2, %v119
    %v121 = vrot.slane %v100, %v120
    %v122 = vlaneseq
    %v123 = vshrl.u32 %v122, 7
    %v124 = vsub.s32 3, %v123
    %v125 = vrot.slane %v100, %v124
    %v130 = vmul.f32 %v103, %v113
    %v131 = vmul.f32 %v103, %v117
    %v132 = vmul.f32 %v103, %v121
    %v133 = vmul.f32 %v103, %v125
    %v134 = vmul.f32 %v107, %v113
    %v135 = vmul.f32 %v107, %v117
    %v136 = vmul.f32 %v107, %v121
    %v137 = vmul.f32 %v107, %v125
    %v138 = vadd.f32 %v91, %v130
    %v139 = vadd.f32 %v92, %v131
    %v140 = vadd.f32 %v93, %v132
    %v141 = vadd.f32 %v94, %v133
    %v142 = vadd.f32 %v95, %v134
    %v143 = vadd.f32 %v96, %v135
    %v144 = vadd.f32 %v97, %v136
    %v145 = vadd.f32 %v98, %v137
    %s146 = scalar_lea.vmem [#allocation2], 2
    %v147 = vld [vmem:[%s146] ss:$8 sm:$0xf]
    %v149 = vlaneseq
    %v150 = vshrl.u32 %v149, 7
    %v151 = vsub.s32 0, %v150
    %v152 = vrot.slane %v147, %v151
    %v153 = vlaneseq
    %v154 = vshrl.u32 %v153, 7
    %v155 = vsub.s32 1, %v154
    %v156 = vrot.slane %v147, %v155
    %v157 = vlaneseq
    %v158 = vshrl.u32 %v157, 7
    %v159 = vsub.s32 2, %v158
    %v160 = vrot.slane %v147, %v159
    %v161 = vlaneseq
    %v162 = vshrl.u32 %v161, 7
    %v163 = vsub.s32 3, %v162
    %v164 = vrot.slane %v147, %v163
    %v169 = vadd.f32 %v138, %v152
    %v170 = vadd.f32 %v139, %v156
    %v171 = vadd.f32 %v140, %v160
    %v172 = vadd.f32 %v141, %v164
    %v173 = vadd.f32 %v142, %v152
    %v174 = vadd.f32 %v143, %v156
    %v175 = vadd.f32 %v144, %v160
    %v176 = vadd.f32 %v145, %v164
    %v177 = vmax.f32 %v169, 0.0
    %v178 = vmax.f32 %v170, 0.0
    %v179 = vmax.f32 %v171, 0.0
    %v180 = vmax.f32 %v172, 0.0
    %v181 = vmax.f32 %v173, 0.0
    %v182 = vmax.f32 %v174, 0.0
    %v183 = vmax.f32 %v175, 0.0
    %v184 = vmax.f32 %v176, 0.0
    %v185 = vpack.c.bf16 %v181, %v177
    %v186 = vpack.c.bf16 %v182, %v178
    %v187 = vpack.c.bf16 %v183, %v179
    %v188 = vpack.c.bf16 %v184, %v180
    %v189 = vld [vmem:[#allocation4] sm:$0xff]
    %v190 = vld [vmem:[#allocation4 + $0x8] sm:$0xff]
    %v191 = vld [vmem:[#allocation4 + $0x10] sm:$0xff]
    %v192 = vld [vmem:[#allocation4 + $0x18] sm:$0xff]
    %v193 = vld [vmem:[#allocation4 + $0x20] sm:$0xff]
    %v194 = vld [vmem:[#allocation4 + $0x28] sm:$0xff]
    %v195 = vld [vmem:[#allocation4 + $0x30] sm:$0xff]
    %v196 = vld [vmem:[#allocation4 + $0x38] sm:$0xff]
    %v197 = vld [vmem:[#allocation4 + $0x40] sm:$0xff]
    %v198 = vld [vmem:[#allocation4 + $0x48] sm:$0xff]
    %v199 = vld [vmem:[#allocation4 + $0x50] sm:$0xff]
    %v200 = vld [vmem:[#allocation4 + $0x58] sm:$0xff]
    %v201 = vld [vmem:[#allocation4 + $0x60] sm:$0xff]
    %v202 = vld [vmem:[#allocation4 + $0x68] sm:$0xff]
    %v203 = vld [vmem:[#allocation4 + $0x70] sm:$0xff]
    %v204 = vld [vmem:[#allocation4 + $0x78] sm:$0xff]
    %v205 = vld [vmem:[#allocation4 + $0x80] sm:$0xff]
    %v206 = vld [vmem:[#allocation4 + $0x88] sm:$0xff]
    %v207 = vld [vmem:[#allocation4 + $0x90] sm:$0xff]
    %v208 = vld [vmem:[#allocation4 + $0x98] sm:$0xff]
    %v209 = vld [vmem:[#allocation4 + $0xa0] sm:$0xff]
    %v210 = vld [vmem:[#allocation4 + $0xa8] sm:$0xff]
    %v211 = vld [vmem:[#allocation4 + $0xb0] sm:$0xff]
    %v212 = vld [vmem:[#allocation4 + $0xb8] sm:$0xff]
    %v213 = vld [vmem:[#allocation4 + $0xc0] sm:$0xff]
    %v214 = vld [vmem:[#allocation4 + $0xc8] sm:$0xff]
    %v215 = vld [vmem:[#allocation4 + $0xd0] sm:$0xff]
    %v216 = vld [vmem:[#allocation4 + $0xd8] sm:$0xff]
    %v217 = vld [vmem:[#allocation4 + $0xe0] sm:$0xff]
    %v218 = vld [vmem:[#allocation4 + $0xe8] sm:$0xff]
    %v219 = vld [vmem:[#allocation4 + $0xf0] sm:$0xff]
    %v220 = vld [vmem:[#allocation4 + $0xf8] sm:$0xff]
    %v221 = vld [vmem:[#allocation4 + $0x100] sm:$0xff]
    %v222 = vld [vmem:[#allocation4 + $0x108] sm:$0xff]
    %v223 = vld [vmem:[#allocation4 + $0x110] sm:$0xff]
    %v224 = vld [vmem:[#allocation4 + $0x118] sm:$0xff]
    %v225 = vld [vmem:[#allocation4 + $0x120] sm:$0xff]
    %v226 = vld [vmem:[#allocation4 + $0x128] sm:$0xff]
    %v227 = vld [vmem:[#allocation4 + $0x130] sm:$0xff]
    %v228 = vld [vmem:[#allocation4 + $0x138] sm:$0xff]
    %v229 = vld [vmem:[#allocation4 + $0x140] sm:$0xff]
    %v230 = vld [vmem:[#allocation4 + $0x148] sm:$0xff]
    %v231 = vld [vmem:[#allocation4 + $0x150] sm:$0xff]
    %v232 = vld [vmem:[#allocation4 + $0x158] sm:$0xff]
    %v233 = vld [vmem:[#allocation4 + $0x160] sm:$0xff]
    %v234 = vld [vmem:[#allocation4 + $0x168] sm:$0xff]
    %v235 = vld [vmem:[#allocation4 + $0x170] sm:$0xff]
    %v236 = vld [vmem:[#allocation4 + $0x178] sm:$0xff]
    %v237 = vld [vmem:[#allocation4 + $0x180] sm:$0xff]
    %v238 = vld [vmem:[#allocation4 + $0x188] sm:$0xff]
    %v239 = vld [vmem:[#allocation4 + $0x190] sm:$0xff]
    %v240 = vld [vmem:[#allocation4 + $0x198] sm:$0xff]
    %v241 = vld [vmem:[#allocation4 + $0x1a0] sm:$0xff]
    %v242 = vld [vmem:[#allocation4 + $0x1a8] sm:$0xff]
    %v243 = vld [vmem:[#allocation4 + $0x1b0] sm:$0xff]
    %v244 = vld [vmem:[#allocation4 + $0x1b8] sm:$0xff]
    %v245 = vld [vmem:[#allocation4 + $0x1c0] sm:$0xff]
    %v246 = vld [vmem:[#allocation4 + $0x1c8] sm:$0xff]
    %v247 = vld [vmem:[#allocation4 + $0x1d0] sm:$0xff]
    %v248 = vld [vmem:[#allocation4 + $0x1d8] sm:$0xff]
    %v249 = vld [vmem:[#allocation4 + $0x1e0] sm:$0xff]
    %v250 = vld [vmem:[#allocation4 + $0x1e8] sm:$0xff]
    %v251 = vld [vmem:[#allocation4 + $0x1f0] sm:$0xff]
    %v252 = vld [vmem:[#allocation4 + $0x1f8] sm:$0xff]
    %v253 = vld [vmem:[#allocation4 + $0x200] sm:$0xff]
    %v254 = vld [vmem:[#allocation4 + $0x208] sm:$0xff]
    %v255 = vld [vmem:[#allocation4 + $0x210] sm:$0xff]
    %v256 = vld [vmem:[#allocation4 + $0x218] sm:$0xff]
    %v257 = vld [vmem:[#allocation4 + $0x220] sm:$0xff]
    %v258 = vld [vmem:[#allocation4 + $0x228] sm:$0xff]
    %v259 = vld [vmem:[#allocation4 + $0x230] sm:$0xff]
    %v260 = vld [vmem:[#allocation4 + $0x238] sm:$0xff]
    %v261 = vld [vmem:[#allocation4 + $0x240] sm:$0xff]
    %v262 = vld [vmem:[#allocation4 + $0x248] sm:$0xff]
    %v263 = vld [vmem:[#allocation4 + $0x250] sm:$0xff]
    %v264 = vld [vmem:[#allocation4 + $0x258] sm:$0xff]
    %v265 = vld [vmem:[#allocation4 + $0x260] sm:$0xff]
    %v266 = vld [vmem:[#allocation4 + $0x268] sm:$0xff]
    %v267 = vld [vmem:[#allocation4 + $0x270] sm:$0xff]
    %v268 = vld [vmem:[#allocation4 + $0x278] sm:$0xff]
    %v269 = vld [vmem:[#allocation4 + $0x280] sm:$0xff]
    %v270 = vld [vmem:[#allocation4 + $0x288] sm:$0xff]
    %v271 = vld [vmem:[#allocation4 + $0x290] sm:$0xff]
    %v272 = vld [vmem:[#allocation4 + $0x298] sm:$0xff]
    %v273 = vld [vmem:[#allocation4 + $0x2a0] sm:$0xff]
    %v274 = vld [vmem:[#allocation4 + $0x2a8] sm:$0xff]
    %v275 = vld [vmem:[#allocation4 + $0x2b0] sm:$0xff]
    %v276 = vld [vmem:[#allocation4 + $0x2b8] sm:$0xff]
    %v277 = vld [vmem:[#allocation4 + $0x2c0] sm:$0xff]
    %v278 = vld [vmem:[#allocation4 + $0x2c8] sm:$0xff]
    %v279 = vld [vmem:[#allocation4 + $0x2d0] sm:$0xff]
    %v280 = vld [vmem:[#allocation4 + $0x2d8] sm:$0xff]
    %v281 = vld [vmem:[#allocation4 + $0x2e0] sm:$0xff]
    %v282 = vld [vmem:[#allocation4 + $0x2e8] sm:$0xff]
    %v283 = vld [vmem:[#allocation4 + $0x2f0] sm:$0xff]
    %v284 = vld [vmem:[#allocation4 + $0x2f8] sm:$0xff]
    %v285 = vld [vmem:[#allocation4 + $0x300] sm:$0xff]
    %v286 = vld [vmem:[#allocation4 + $0x308] sm:$0xff]
    %v287 = vld [vmem:[#allocation4 + $0x310] sm:$0xff]
    %v288 = vld [vmem:[#allocation4 + $0x318] sm:$0xff]
    %v289 = vld [vmem:[#allocation4 + $0x320] sm:$0xff]
    %v290 = vld [vmem:[#allocation4 + $0x328] sm:$0xff]
    %v291 = vld [vmem:[#allocation4 + $0x330] sm:$0xff]
    %v292 = vld [vmem:[#allocation4 + $0x338] sm:$0xff]
    %v293 = vld [vmem:[#allocation4 + $0x340] sm:$0xff]
    %v294 = vld [vmem:[#allocation4 + $0x348] sm:$0xff]
    %v295 = vld [vmem:[#allocation4 + $0x350] sm:$0xff]
    %v296 = vld [vmem:[#allocation4 + $0x358] sm:$0xff]
    %v297 = vld [vmem:[#allocation4 + $0x360] sm:$0xff]
    %v298 = vld [vmem:[#allocation4 + $0x368] sm:$0xff]
    %v299 = vld [vmem:[#allocation4 + $0x370] sm:$0xff]
    %v300 = vld [vmem:[#allocation4 + $0x378] sm:$0xff]
    %v301 = vld [vmem:[#allocation4 + $0x380] sm:$0xff]
    %v302 = vld [vmem:[#allocation4 + $0x388] sm:$0xff]
    %v303 = vld [vmem:[#allocation4 + $0x390] sm:$0xff]
    %v304 = vld [vmem:[#allocation4 + $0x398] sm:$0xff]
    %v305 = vld [vmem:[#allocation4 + $0x3a0] sm:$0xff]
    %v306 = vld [vmem:[#allocation4 + $0x3a8] sm:$0xff]
    %v307 = vld [vmem:[#allocation4 + $0x3b0] sm:$0xff]
    %v308 = vld [vmem:[#allocation4 + $0x3b8] sm:$0xff]
    %v309 = vld [vmem:[#allocation4 + $0x3c0] sm:$0xff]
    %v310 = vld [vmem:[#allocation4 + $0x3c8] sm:$0xff]
    %v311 = vld [vmem:[#allocation4 + $0x3d0] sm:$0xff]
    %v312 = vld [vmem:[#allocation4 + $0x3d8] sm:$0xff]
    %v313 = vld [vmem:[#allocation4 + $0x3e0] sm:$0xff]
    %v314 = vld [vmem:[#allocation4 + $0x3e8] sm:$0xff]
    %v315 = vld [vmem:[#allocation4 + $0x3f0] sm:$0xff]
    %v316 = vld [vmem:[#allocation4 + $0x3f8] sm:$0xff]
    %s317 = scalar_lea.vmem [#allocation2], 3
    %v318 = vld [vmem:[%s317] ss:$8 sm:$0xf]
    %v320 = vlaneseq
    %v321 = vshrl.u32 %v320, 7
    %v322 = vsub.s32 0, %v321
    %v323 = vrot.slane %v318, %v322
    %v324 = vlaneseq
    %v325 = vshrl.u32 %v324, 7
    %v326 = vsub.s32 1, %v325
    %v327 = vrot.slane %v318, %v326
    %v328 = vlaneseq
    %v329 = vshrl.u32 %v328, 7
    %v330 = vsub.s32 2, %v329
    %v331 = vrot.slane %v318, %v330
    %v332 = vlaneseq
    %v333 = vshrl.u32 %v332, 7
    %v334 = vsub.s32 3, %v333
    %v335 = vrot.slane %v318, %v334
    %v468 = vunpack.c.l.b16 %v189
    %v469 = vunpack.c.h.b16 %v189
    %v470 = vunpack.c.l.b16 %v190
    %v471 = vunpack.c.h.b16 %v190
    %v472 = vunpack.c.l.b16 %v191
    %v473 = vunpack.c.h.b16 %v191
    %v474 = vunpack.c.l.b16 %v192
    %v475 = vunpack.c.h.b16 %v192
    %v476 = vunpack.c.l.b16 %v193
    %v477 = vunpack.c.h.b16 %v193
    %v478 = vunpack.c.l.b16 %v194
    %v479 = vunpack.c.h.b16 %v194
    %v480 = vunpack.c.l.b16 %v195
    %v481 = vunpack.c.h.b16 %v195
    %v482 = vunpack.c.l.b16 %v196
    %v483 = vunpack.c.h.b16 %v196
    %v484 = vunpack.c.l.b16 %v197
    %v485 = vunpack.c.h.b16 %v197
    %v486 = vunpack.c.l.b16 %v198
    %v487 = vunpack.c.h.b16 %v198
    %v488 = vunpack.c.l.b16 %v199
    %v489 = vunpack.c.h.b16 %v199
    %v490 = vunpack.c.l.b16 %v200
    %v491 = vunpack.c.h.b16 %v200
    %v492 = vunpack.c.l.b16 %v201
    %v493 = vunpack.c.h.b16 %v201
    %v494 = vunpack.c.l.b16 %v202
    %v495 = vunpack.c.h.b16 %v202
    %v496 = vunpack.c.l.b16 %v203
    %v497 = vunpack.c.h.b16 %v203
    %v498 = vunpack.c.l.b16 %v204
    %v499 = vunpack.c.h.b16 %v204
    %v500 = vunpack.c.l.b16 %v205
    %v501 = vunpack.c.h.b16 %v205
    %v502 = vunpack.c.l.b16 %v206
    %v503 = vunpack.c.h.b16 %v206
    %v504 = vunpack.c.l.b16 %v207
    %v505 = vunpack.c.h.b16 %v207
    %v506 = vunpack.c.l.b16 %v208
    %v507 = vunpack.c.h.b16 %v208
    %v508 = vunpack.c.l.b16 %v209
    %v509 = vunpack.c.h.b16 %v209
    %v510 = vunpack.c.l.b16 %v210
    %v511 = vunpack.c.h.b16 %v210
    %v512 = vunpack.c.l.b16 %v211
    %v513 = vunpack.c.h.b16 %v211
    %v514 = vunpack.c.l.b16 %v212
    %v515 = vunpack.c.h.b16 %v212
    %v516 = vunpack.c.l.b16 %v213
    %v517 = vunpack.c.h.b16 %v213
    %v518 = vunpack.c.l.b16 %v214
    %v519 = vunpack.c.h.b16 %v214
    %v520 = vunpack.c.l.b16 %v215
    %v521 = vunpack.c.h.b16 %v215
    %v522 = vunpack.c.l.b16 %v216
    %v523 = vunpack.c.h.b16 %v216
    %v524 = vunpack.c.l.b16 %v217
    %v525 = vunpack.c.h.b16 %v217
    %v526 = vunpack.c.l.b16 %v218
    %v527 = vunpack.c.h.b16 %v218
    %v528 = vunpack.c.l.b16 %v219
    %v529 = vunpack.c.h.b16 %v219
    %v530 = vunpack.c.l.b16 %v220
    %v531 = vunpack.c.h.b16 %v220
    %v532 = vunpack.c.l.b16 %v221
    %v533 = vunpack.c.h.b16 %v221
    %v534 = vunpack.c.l.b16 %v222
    %v535 = vunpack.c.h.b16 %v222
    %v536 = vunpack.c.l.b16 %v223
    %v537 = vunpack.c.h.b16 %v223
    %v538 = vunpack.c.l.b16 %v224
    %v539 = vunpack.c.h.b16 %v224
    %v540 = vunpack.c.l.b16 %v225
    %v541 = vunpack.c.h.b16 %v225
    %v542 = vunpack.c.l.b16 %v226
    %v543 = vunpack.c.h.b16 %v226
    %v544 = vunpack.c.l.b16 %v227
    %v545 = vunpack.c.h.b16 %v227
    %v546 = vunpack.c.l.b16 %v228
    %v547 = vunpack.c.h.b16 %v228
    %v548 = vunpack.c.l.b16 %v229
    %v549 = vunpack.c.h.b16 %v229
    %v550 = vunpack.c.l.b16 %v230
    %v551 = vunpack.c.h.b16 %v230
    %v552 = vunpack.c.l.b16 %v231
    %v553 = vunpack.c.h.b16 %v231
    %v554 = vunpack.c.l.b16 %v232
    %v555 = vunpack.c.h.b16 %v232
    %v556 = vunpack.c.l.b16 %v233
    %v557 = vunpack.c.h.b16 %v233
    %v558 = vunpack.c.l.b16 %v234
    %v559 = vunpack.c.h.b16 %v234
    %v560 = vunpack.c.l.b16 %v235
    %v561 = vunpack.c.h.b16 %v235
    %v562 = vunpack.c.l.b16 %v236
    %v563 = vunpack.c.h.b16 %v236
    %v564 = vunpack.c.l.b16 %v237
    %v565 = vunpack.c.h.b16 %v237
    %v566 = vunpack.c.l.b16 %v238
    %v567 = vunpack.c.h.b16 %v238
    %v568 = vunpack.c.l.b16 %v239
    %v569 = vunpack.c.h.b16 %v239
    %v570 = vunpack.c.l.b16 %v240
    %v571 = vunpack.c.h.b16 %v240
    %v572 = vunpack.c.l.b16 %v241
    %v573 = vunpack.c.h.b16 %v241
    %v574 = vunpack.c.l.b16 %v242
    %v575 = vunpack.c.h.b16 %v242
    %v576 = vunpack.c.l.b16 %v243
    %v577 = vunpack.c.h.b16 %v243
    %v578 = vunpack.c.l.b16 %v244
    %v579 = vunpack.c.h.b16 %v244
    %v580 = vunpack.c.l.b16 %v245
    %v581 = vunpack.c.h.b16 %v245
    %v582 = vunpack.c.l.b16 %v246
    %v583 = vunpack.c.h.b16 %v246
    %v584 = vunpack.c.l.b16 %v247
    %v585 = vunpack.c.h.b16 %v247
    %v586 = vunpack.c.l.b16 %v248
    %v587 = vunpack.c.h.b16 %v248
    %v588 = vunpack.c.l.b16 %v249
    %v589 = vunpack.c.h.b16 %v249
    %v590 = vunpack.c.l.b16 %v250
    %v591 = vunpack.c.h.b16 %v250
    %v592 = vunpack.c.l.b16 %v251
    %v593 = vunpack.c.h.b16 %v251
    %v594 = vunpack.c.l.b16 %v252
    %v595 = vunpack.c.h.b16 %v252
    %v596 = vunpack.c.l.b16 %v253
    %v597 = vunpack.c.h.b16 %v253
    %v598 = vunpack.c.l.b16 %v254
    %v599 = vunpack.c.h.b16 %v254
    %v600 = vunpack.c.l.b16 %v255
    %v601 = vunpack.c.h.b16 %v255
    %v602 = vunpack.c.l.b16 %v256
    %v603 = vunpack.c.h.b16 %v256
    %v604 = vunpack.c.l.b16 %v257
    %v605 = vunpack.c.h.b16 %v257
    %v606 = vunpack.c.l.b16 %v258
    %v607 = vunpack.c.h.b16 %v258
    %v608 = vunpack.c.l.b16 %v259
    %v609 = vunpack.c.h.b16 %v259
    %v610 = vunpack.c.l.b16 %v260
    %v611 = vunpack.c.h.b16 %v260
    %v612 = vunpack.c.l.b16 %v261
    %v613 = vunpack.c.h.b16 %v261
    %v614 = vunpack.c.l.b16 %v262
    %v615 = vunpack.c.h.b16 %v262
    %v616 = vunpack.c.l.b16 %v263
    %v617 = vunpack.c.h.b16 %v263
    %v618 = vunpack.c.l.b16 %v264
    %v619 = vunpack.c.h.b16 %v264
    %v620 = vunpack.c.l.b16 %v265
    %v621 = vunpack.c.h.b16 %v265
    %v622 = vunpack.c.l.b16 %v266
    %v623 = vunpack.c.h.b16 %v266
    %v624 = vunpack.c.l.b16 %v267
    %v625 = vunpack.c.h.b16 %v267
    %v626 = vunpack.c.l.b16 %v268
    %v627 = vunpack.c.h.b16 %v268
    %v628 = vunpack.c.l.b16 %v269
    %v629 = vunpack.c.h.b16 %v269
    %v630 = vunpack.c.l.b16 %v270
    %v631 = vunpack.c.h.b16 %v270
    %v632 = vunpack.c.l.b16 %v271
    %v633 = vunpack.c.h.b16 %v271
    %v634 = vunpack.c.l.b16 %v272
    %v635 = vunpack.c.h.b16 %v272
    %v636 = vunpack.c.l.b16 %v273
    %v637 = vunpack.c.h.b16 %v273
    %v638 = vunpack.c.l.b16 %v274
    %v639 = vunpack.c.h.b16 %v274
    %v640 = vunpack.c.l.b16 %v275
    %v641 = vunpack.c.h.b16 %v275
    %v642 = vunpack.c.l.b16 %v276
    %v643 = vunpack.c.h.b16 %v276
    %v644 = vunpack.c.l.b16 %v277
    %v645 = vunpack.c.h.b16 %v277
    %v646 = vunpack.c.l.b16 %v278
    %v647 = vunpack.c.h.b16 %v278
    %v648 = vunpack.c.l.b16 %v279
    %v649 = vunpack.c.h.b16 %v279
    %v650 = vunpack.c.l.b16 %v280
    %v651 = vunpack.c.h.b16 %v280
    %v652 = vunpack.c.l.b16 %v281
    %v653 = vunpack.c.h.b16 %v281
    %v654 = vunpack.c.l.b16 %v282
    %v655 = vunpack.c.h.b16 %v282
    %v656 = vunpack.c.l.b16 %v283
    %v657 = vunpack.c.h.b16 %v283
    %v658 = vunpack.c.l.b16 %v284
    %v659 = vunpack.c.h.b16 %v284
    %v660 = vunpack.c.l.b16 %v285
    %v661 = vunpack.c.h.b16 %v285
    %v662 = vunpack.c.l.b16 %v286
    %v663 = vunpack.c.h.b16 %v286
    %v664 = vunpack.c.l.b16 %v287
    %v665 = vunpack.c.h.b16 %v287
    %v666 = vunpack.c.l.b16 %v288
    %v667 = vunpack.c.h.b16 %v288
    %v668 = vunpack.c.l.b16 %v289
    %v669 = vunpack.c.h.b16 %v289
    %v670 = vunpack.c.l.b16 %v290
    %v671 = vunpack.c.h.b16 %v290
    %v672 = vunpack.c.l.b16 %v291
    %v673 = vunpack.c.h.b16 %v291
    %v674 = vunpack.c.l.b16 %v292
    %v675 = vunpack.c.h.b16 %v292
    %v676 = vunpack.c.l.b16 %v293
    %v677 = vunpack.c.h.b16 %v293
    %v678 = vunpack.c.l.b16 %v294
    %v679 = vunpack.c.h.b16 %v294
    %v680 = vunpack.c.l.b16 %v295
    %v681 = vunpack.c.h.b16 %v295
    %v682 = vunpack.c.l.b16 %v296
    %v683 = vunpack.c.h.b16 %v296
    %v684 = vunpack.c.l.b16 %v297
    %v685 = vunpack.c.h.b16 %v297
    %v686 = vunpack.c.l.b16 %v298
    %v687 = vunpack.c.h.b16 %v298
    %v688 = vunpack.c.l.b16 %v299
    %v689 = vunpack.c.h.b16 %v299
    %v690 = vunpack.c.l.b16 %v300
    %v691 = vunpack.c.h.b16 %v300
    %v692 = vunpack.c.l.b16 %v301
    %v693 = vunpack.c.h.b16 %v301
    %v694 = vunpack.c.l.b16 %v302
    %v695 = vunpack.c.h.b16 %v302
    %v696 = vunpack.c.l.b16 %v303
    %v697 = vunpack.c.h.b16 %v303
    %v698 = vunpack.c.l.b16 %v304
    %v699 = vunpack.c.h.b16 %v304
    %v700 = vunpack.c.l.b16 %v305
    %v701 = vunpack.c.h.b16 %v305
    %v702 = vunpack.c.l.b16 %v306
    %v703 = vunpack.c.h.b16 %v306
    %v704 = vunpack.c.l.b16 %v307
    %v705 = vunpack.c.h.b16 %v307
    %v706 = vunpack.c.l.b16 %v308
    %v707 = vunpack.c.h.b16 %v308
    %v708 = vunpack.c.l.b16 %v309
    %v709 = vunpack.c.h.b16 %v309
    %v710 = vunpack.c.l.b16 %v310
    %v711 = vunpack.c.h.b16 %v310
    %v712 = vunpack.c.l.b16 %v311
    %v713 = vunpack.c.h.b16 %v311
    %v714 = vunpack.c.l.b16 %v312
    %v715 = vunpack.c.h.b16 %v312
    %v716 = vunpack.c.l.b16 %v313
    %v717 = vunpack.c.h.b16 %v313
    %v718 = vunpack.c.l.b16 %v314
    %v719 = vunpack.c.h.b16 %v314
    %v720 = vunpack.c.l.b16 %v315
    %v721 = vunpack.c.h.b16 %v315
    %v722 = vunpack.c.l.b16 %v316
    %v723 = vunpack.c.h.b16 %v316
    %v724 = vpack.c.b16 %v472, %v468
    %v725 = vpack.c.b16 %v473, %v469
    %v726 = vpack.c.b16 %v474, %v470
    %v727 = vpack.c.b16 %v475, %v471
    %v728 = vpack.c.b16 %v480, %v476
    %v729 = vpack.c.b16 %v481, %v477
    %v730 = vpack.c.b16 %v482, %v478
    %v731 = vpack.c.b16 %v483, %v479
    %v732 = vpack.c.b16 %v488, %v484
    %v733 = vpack.c.b16 %v489, %v485
    %v734 = vpack.c.b16 %v490, %v486
    %v735 = vpack.c.b16 %v491, %v487
    %v736 = vpack.c.b16 %v496, %v492
    %v737 = vpack.c.b16 %v497, %v493
    %v738 = vpack.c.b16 %v498, %v494
    %v739 = vpack.c.b16 %v499, %v495
    %v740 = vpack.c.b16 %v504, %v500
    %v741 = vpack.c.b16 %v505, %v501
    %v742 = vpack.c.b16 %v506, %v502
    %v743 = vpack.c.b16 %v507, %v503
    %v744 = vpack.c.b16 %v512, %v508
    %v745 = vpack.c.b16 %v513, %v509
    %v746 = vpack.c.b16 %v514, %v510
    %v747 = vpack.c.b16 %v515, %v511
    %v748 = vpack.c.b16 %v520, %v516
    %v749 = vpack.c.b16 %v521, %v517
    %v750 = vpack.c.b16 %v522, %v518
    %v751 = vpack.c.b16 %v523, %v519
    %v752 = vpack.c.b16 %v528, %v524
    %v753 = vpack.c.b16 %v529, %v525
    %v754 = vpack.c.b16 %v530, %v526
    %v755 = vpack.c.b16 %v531, %v527
    %v756 = vpack.c.b16 %v536, %v532
    %v757 = vpack.c.b16 %v537, %v533
    %v758 = vpack.c.b16 %v538, %v534
    %v759 = vpack.c.b16 %v539, %v535
    %v760 = vpack.c.b16 %v544, %v540
    %v761 = vpack.c.b16 %v545, %v541
    %v762 = vpack.c.b16 %v546, %v542
    %v763 = vpack.c.b16 %v547, %v543
    %v764 = vpack.c.b16 %v552, %v548
    %v765 = vpack.c.b16 %v553, %v549
    %v766 = vpack.c.b16 %v554, %v550
    %v767 = vpack.c.b16 %v555, %v551
    %v768 = vpack.c.b16 %v560, %v556
    %v769 = vpack.c.b16 %v561, %v557
    %v770 = vpack.c.b16 %v562, %v558
    %v771 = vpack.c.b16 %v563, %v559
    %v772 = vpack.c.b16 %v568, %v564
    %v773 = vpack.c.b16 %v569, %v565
    %v774 = vpack.c.b16 %v570, %v566
    %v775 = vpack.c.b16 %v571, %v567
    %v776 = vpack.c.b16 %v576, %v572
    %v777 = vpack.c.b16 %v577, %v573
    %v778 = vpack.c.b16 %v578, %v574
    %v779 = vpack.c.b16 %v579, %v575
    %v780 = vpack.c.b16 %v584, %v580
    %v781 = vpack.c.b16 %v585, %v581
    %v782 = vpack.c.b16 %v586, %v582
    %v783 = vpack.c.b16 %v587, %v583
    %v784 = vpack.c.b16 %v592, %v588
    %v785 = vpack.c.b16 %v593, %v589
    %v786 = vpack.c.b16 %v594, %v590
    %v787 = vpack.c.b16 %v595, %v591
    %v788 = vpack.c.b16 %v600, %v596
    %v789 = vpack.c.b16 %v601, %v597
    %v790 = vpack.c.b16 %v602, %v598
    %v791 = vpack.c.b16 %v603, %v599
    %v792 = vpack.c.b16 %v608, %v604
    %v793 = vpack.c.b16 %v609, %v605
    %v794 = vpack.c.b16 %v610, %v606
    %v795 = vpack.c.b16 %v611, %v607
    %v796 = vpack.c.b16 %v616, %v612
    %v797 = vpack.c.b16 %v617, %v613
    %v798 = vpack.c.b16 %v618, %v614
    %v799 = vpack.c.b16 %v619, %v615
    %v800 = vpack.c.b16 %v624, %v620
    %v801 = vpack.c.b16 %v625, %v621
    %v802 = vpack.c.b16 %v626, %v622
    %v803 = vpack.c.b16 %v627, %v623
    %v804 = vpack.c.b16 %v632, %v628
    %v805 = vpack.c.b16 %v633, %v629
    %v806 = vpack.c.b16 %v634, %v630
    %v807 = vpack.c.b16 %v635, %v631
    %v808 = vpack.c.b16 %v640, %v636
    %v809 = vpack.c.b16 %v641, %v637
    %v810 = vpack.c.b16 %v642, %v638
    %v811 = vpack.c.b16 %v643, %v639
    %v812 = vpack.c.b16 %v648, %v644
    %v813 = vpack.c.b16 %v649, %v645
    %v814 = vpack.c.b16 %v650, %v646
    %v815 = vpack.c.b16 %v651, %v647
    %v816 = vpack.c.b16 %v656, %v652
    %v817 = vpack.c.b16 %v657, %v653
    %v818 = vpack.c.b16 %v658, %v654
    %v819 = vpack.c.b16 %v659, %v655
    %v820 = vpack.c.b16 %v664, %v660
    %v821 = vpack.c.b16 %v665, %v661
    %v822 = vpack.c.b16 %v666, %v662
    %v823 = vpack.c.b16 %v667, %v663
    %v824 = vpack.c.b16 %v672, %v668
    %v825 = vpack.c.b16 %v673, %v669
    %v826 = vpack.c.b16 %v674, %v670
    %v827 = vpack.c.b16 %v675, %v671
    %v828 = vpack.c.b16 %v680, %v676
    %v829 = vpack.c.b16 %v681, %v677
    %v830 = vpack.c.b16 %v682, %v678
    %v831 = vpack.c.b16 %v683, %v679
    %v832 = vpack.c.b16 %v688, %v684
    %v833 = vpack.c.b16 %v689, %v685
    %v834 = vpack.c.b16 %v690, %v686
    %v835 = vpack.c.b16 %v691, %v687
    %v836 = vpack.c.b16 %v696, %v692
    %v837 = vpack.c.b16 %v697, %v693
    %v838 = vpack.c.b16 %v698, %v694
    %v839 = vpack.c.b16 %v699, %v695
    %v840 = vpack.c.b16 %v704, %v700
    %v841 = vpack.c.b16 %v705, %v701
    %v842 = vpack.c.b16 %v706, %v702
    %v843 = vpack.c.b16 %v707, %v703
    %v844 = vpack.c.b16 %v712, %v708
    %v845 = vpack.c.b16 %v713, %v709
    %v846 = vpack.c.b16 %v714, %v710
    %v847 = vpack.c.b16 %v715, %v711
    %v848 = vpack.c.b16 %v720, %v716
    %v849 = vpack.c.b16 %v721, %v717
    %v850 = vpack.c.b16 %v722, %v718
    %v851 = vpack.c.b16 %v723, %v719
    %980 = vmatprep.subr.bf16.mxu0 %v725
    %981 = vmatpush1.bf16.msra.mxu0 %v724
    %982 = vmatprep.subr.bf16.mxu0 %v729
    %983 = vmatpush1.bf16.msra.mxu0 %v728
    %984 = vmatprep.subr.bf16.mxu0 %v733
    %985 = vmatpush1.bf16.msra.mxu0 %v732
    %986 = vmatprep.subr.bf16.mxu0 %v737
    %987 = vmatpush1.bf16.msra.mxu0 %v736
    %988 = vmatprep.subr.bf16.mxu0 %v741
    %989 = vmatpush1.bf16.msra.mxu0 %v740
    %990 = vmatprep.subr.bf16.mxu0 %v745
    %991 = vmatpush1.bf16.msra.mxu0 %v744
    %992 = vmatprep.subr.bf16.mxu0 %v749
    %993 = vmatpush1.bf16.msra.mxu0 %v748
    %994 = vmatprep.subr.bf16.mxu0 %v753
    %995 = vmatpush1.bf16.msra.mxu0 %v752
    %996 = vmatprep.subr.bf16.mxu0 %v757
    %997 = vmatpush1.bf16.msra.mxu0 %v756
    %998 = vmatprep.subr.bf16.mxu0 %v761
    %999 = vmatpush1.bf16.msra.mxu0 %v760
    %1000 = vmatprep.subr.bf16.mxu0 %v765
    %1001 = vmatpush1.bf16.msra.mxu0 %v764
    %1002 = vmatprep.subr.bf16.mxu0 %v769
    %1003 = vmatpush1.bf16.msra.mxu0 %v768
    %1004 = vmatprep.subr.bf16.mxu0 %v773
    %1005 = vmatpush1.bf16.msra.mxu0 %v772
    %1006 = vmatprep.subr.bf16.mxu0 %v777
    %1007 = vmatpush1.bf16.msra.mxu0 %v776
    %1008 = vmatprep.subr.bf16.mxu0 %v781
    %1009 = vmatpush1.bf16.msra.mxu0 %v780
    %1010 = vmatprep.subr.bf16.mxu0 %v785
    %1011 = vmatpush1.bf16.msra.mxu0 %v784
    %1012 = vmatprep.mubr.bf16.mxu0 %v186
    %1013 = vmatmul.mubr.bf16.gmra.mrb[0].mxu0 %v185
    %v1014 = vpop.f32.mrb[0].mxu0
    %v1015 = vadd.f32 %v323, %v1014
    %v1016 = vpop.f32.mrb[0].mxu0
    %v1017 = vadd.f32 %v327, %v1016
    %v1018 = vpop.f32.mrb[0].mxu0
    %v1019 = vadd.f32 %v323, %v1018
    %v1020 = vpop.f32.mrb[0].mxu0
    %v1021 = vadd.f32 %v327, %v1020
    %1022 = vdwg.mxu0
    %1023 = vmatprep.subr.bf16.mxu0 %v789
    %1024 = vmatpush1.bf16.msra.mxu0 %v788
    %1025 = vmatprep.subr.bf16.mxu0 %v793
    %1026 = vmatpush1.bf16.msra.mxu0 %v792
    %1027 = vmatprep.subr.bf16.mxu0 %v797
    %1028 = vmatpush1.bf16.msra.mxu0 %v796
    %1029 = vmatprep.subr.bf16.mxu0 %v801
    %1030 = vmatpush1.bf16.msra.mxu0 %v800
    %1031 = vmatprep.subr.bf16.mxu0 %v805
    %1032 = vmatpush1.bf16.msra.mxu0 %v804
    %1033 = vmatprep.subr.bf16.mxu0 %v809
    %1034 = vmatpush1.bf16.msra.mxu0 %v808
    %1035 = vmatprep.subr.bf16.mxu0 %v813
    %1036 = vmatpush1.bf16.msra.mxu0 %v812
    %1037 = vmatprep.subr.bf16.mxu0 %v817
    %1038 = vmatpush1.bf16.msra.mxu0 %v816
    %1039 = vmatprep.subr.bf16.mxu0 %v821
    %1040 = vmatpush1.bf16.msra.mxu0 %v820
    %1041 = vmatprep.subr.bf16.mxu0 %v825
    %1042 = vmatpush1.bf16.msra.mxu0 %v824
    %1043 = vmatprep.subr.bf16.mxu0 %v829
    %1044 = vmatpush1.bf16.msra.mxu0 %v828
    %1045 = vmatprep.subr.bf16.mxu0 %v833
    %1046 = vmatpush1.bf16.msra.mxu0 %v832
    %1047 = vmatprep.subr.bf16.mxu0 %v837
    %1048 = vmatpush1.bf16.msra.mxu0 %v836
    %1049 = vmatprep.subr.bf16.mxu0 %v841
    %1050 = vmatpush1.bf16.msra.mxu0 %v840
    %1051 = vmatprep.subr.bf16.mxu0 %v845
    %1052 = vmatpush1.bf16.msra.mxu0 %v844
    %1053 = vmatprep.subr.bf16.mxu0 %v849
    %1054 = vmatpush1.bf16.msra.mxu0 %v848
    %1055 = vmatprep.mubr.bf16.mxu0 %v188
    %1056 = vmatmul.mubr.bf16.gmra.mrb[0].mxu0 %v187
    %v1057 = vpop.f32.mrb[0].mxu0
    %v1058 = vadd.f32 %v1015, %v1057
    %v1059 = vpop.f32.mrb[0].mxu0
    %v1060 = vadd.f32 %v1017, %v1059
    %v1061 = vpop.f32.mrb[0].mxu0
    %v1062 = vadd.f32 %v1019, %v1061
    %v1063 = vpop.f32.mrb[0].mxu0
    %v1064 = vadd.f32 %v1021, %v1063
    %1065 = vdwg.mxu0
    %1066 = vmatprep.subr.bf16.mxu0 %v727
    %1067 = vmatpush1.bf16.msra.mxu0 %v726
    %1068 = vmatprep.subr.bf16.mxu0 %v731
    %1069 = vmatpush1.bf16.msra.mxu0 %v730
    %1070 = vmatprep.subr.bf16.mxu0 %v735
    %1071 = vmatpush1.bf16.msra.mxu0 %v734
    %1072 = vmatprep.subr.bf16.mxu0 %v739
    %1073 = vmatpush1.bf16.msra.mxu0 %v738
    %1074 = vmatprep.subr.bf16.mxu0 %v743
    %1075 = vmatpush1.bf16.msra.mxu0 %v742
    %1076 = vmatprep.subr.bf16.mxu0 %v747
    %1077 = vmatpush1.bf16.msra.mxu0 %v746
    %1078 = vmatprep.subr.bf16.mxu0 %v751
    %1079 = vmatpush1.bf16.msra.mxu0 %v750
    %1080 = vmatprep.subr.bf16.mxu0 %v755
    %1081 = vmatpush1.bf16.msra.mxu0 %v754
    %1082 = vmatprep.subr.bf16.mxu0 %v759
    %1083 = vmatpush1.bf16.msra.mxu0 %v758
    %1084 = vmatprep.subr.bf16.mxu0 %v763
    %1085 = vmatpush1.bf16.msra.mxu0 %v762
    %1086 = vmatprep.subr.bf16.mxu0 %v767
    %1087 = vmatpush1.bf16.msra.mxu0 %v766
    %1088 = vmatprep.subr.bf16.mxu0 %v771
    %1089 = vmatpush1.bf16.msra.mxu0 %v770
    %1090 = vmatprep.subr.bf16.mxu0 %v775
    %1091 = vmatpush1.bf16.msra.mxu0 %v774
    %1092 = vmatprep.subr.bf16.mxu0 %v779
    %1093 = vmatpush1.bf16.msra.mxu0 %v778
    %1094 = vmatprep.subr.bf16.mxu0 %v783
    %1095 = vmatpush1.bf16.msra.mxu0 %v782
    %1096 = vmatprep.subr.bf16.mxu0 %v787
    %1097 = vmatpush1.bf16.msra.mxu0 %v786
    %1098 = vmatprep.mubr.bf16.mxu0 %v186
    %1099 = vmatmul.mubr.bf16.gmra.mrb[0].mxu0 %v185
    %v1100 = vpop.f32.mrb[0].mxu0
    %v1101 = vadd.f32 %v331, %v1100
    %v1102 = vpop.f32.mrb[0].mxu0
    %v1103 = vadd.f32 %v335, %v1102
    %v1104 = vpop.f32.mrb[0].mxu0
    %v1105 = vadd.f32 %v331, %v1104
    %v1106 = vpop.f32.mrb[0].mxu0
    %v1107 = vadd.f32 %v335, %v1106
    %1108 = vdwg.mxu0
    %1109 = vmatprep.subr.bf16.mxu0 %v791
    %1110 = vmatpush1.bf16.msra.mxu0 %v790
    %1111 = vmatprep.subr.bf16.mxu0 %v795
    %1112 = vmatpush1.bf16.msra.mxu0 %v794
    %1113 = vmatprep.subr.bf16.mxu0 %v799
    %1114 = vmatpush1.bf16.msra.mxu0 %v798
    %1115 = vmatprep.subr.bf16.mxu0 %v803
    %1116 = vmatpush1.bf16.msra.mxu0 %v802
    %1117 = vmatprep.subr.bf16.mxu0 %v807
    %1118 = vmatpush1.bf16.msra.mxu0 %v806
    %1119 = vmatprep.subr.bf16.mxu0 %v811
    %1120 = vmatpush1.bf16.msra.mxu0 %v810
    %1121 = vmatprep.subr.bf16.mxu0 %v815
    %1122 = vmatpush1.bf16.msra.mxu0 %v814
    %1123 = vmatprep.subr.bf16.mxu0 %v819
    %1124 = vmatpush1.bf16.msra.mxu0 %v818
    %1125 = vmatprep.subr.bf16.mxu0 %v823
    %1126 = vmatpush1.bf16.msra.mxu0 %v822
    %1127 = vmatprep.subr.bf16.mxu0 %v827
    %1128 = vmatpush1.bf16.msra.mxu0 %v826
    %1129 = vmatprep.subr.bf16.mxu0 %v831
    %1130 = vmatpush1.bf16.msra.mxu0 %v830
    %1131 = vmatprep.subr.bf16.mxu0 %v835
    %1132 = vmatpush1.bf16.msra.mxu0 %v834
    %1133 = vmatprep.subr.bf16.mxu0 %v839
    %1134 = vmatpush1.bf16.msra.mxu0 %v838
    %1135 = vmatprep.subr.bf16.mxu0 %v843
    %1136 = vmatpush1.bf16.msra.mxu0 %v842
    %1137 = vmatprep.subr.bf16.mxu0 %v847
    %1138 = vmatpush1.bf16.msra.mxu0 %v846
    %1139 = vmatprep.subr.bf16.mxu0 %v851
    %1140 = vmatpush1.bf16.msra.mxu0 %v850
    %1141 = vmatprep.mubr.bf16.mxu0 %v188
    %1142 = vmatmul.mubr.bf16.gmra.mrb[0].mxu0 %v187
    %v1143 = vpop.f32.mrb[0].mxu0
    %v1144 = vadd.f32 %v1101, %v1143
    %v1145 = vpop.f32.mrb[0].mxu0
    %v1146 = vadd.f32 %v1103, %v1145
    %v1147 = vpop.f32.mrb[0].mxu0
    %v1148 = vadd.f32 %v1105, %v1147
    %v1149 = vpop.f32.mrb[0].mxu0
    %v1150 = vadd.f32 %v1107, %v1149
    %1151 = vdwg.mxu0
    %v1152 = vmax.f32 %v1058, 0.0
    %v1153 = vmax.f32 %v1060, 0.0
    %v1154 = vmax.f32 %v1144, 0.0
    %v1155 = vmax.f32 %v1146, 0.0
    %v1156 = vmax.f32 %v1062, 0.0
    %v1157 = vmax.f32 %v1064, 0.0
    %v1158 = vmax.f32 %v1148, 0.0
    %v1159 = vmax.f32 %v1150, 0.0
    %v1160 = vpack.c.bf16 %v1156, %v1152
    %v1161 = vpack.c.bf16 %v1157, %v1153
    %v1162 = vpack.c.bf16 %v1158, %v1154
    %v1163 = vpack.c.bf16 %v1159, %v1155
    %v1164 = vld [vmem:[#allocation6] sm:$0xff]
    %v1165 = vld [vmem:[#allocation6 + $0x8] sm:$0xff]
    %v1166 = vld [vmem:[#allocation6 + $0x10] sm:$0xff]
    %v1167 = vld [vmem:[#allocation6 + $0x18] sm:$0xf]
    %v1168 = vld [vmem:[#allocation6 + $0x1c] sm:$0xff]
    %v1169 = vld [vmem:[#allocation6 + $0x24] sm:$0xff]
    %v1170 = vld [vmem:[#allocation6 + $0x2c] sm:$0xff]
    %v1171 = vld [vmem:[#allocation6 + $0x34] sm:$0xf]
    %v1172 = vld [vmem:[#allocation6 + $0x38] sm:$0xff]
    %v1173 = vld [vmem:[#allocation6 + $0x40] sm:$0xff]
    %v1174 = vld [vmem:[#allocation6 + $0x48] sm:$0xff]
    %v1175 = vld [vmem:[#allocation6 + $0x50] sm:$0xf]
    %v1176 = vld [vmem:[#allocation6 + $0x54] sm:$0xff]
    %v1177 = vld [vmem:[#allocation6 + $0x5c] sm:$0xff]
    %v1178 = vld [vmem:[#allocation6 + $0x64] sm:$0xff]
    %v1179 = vld [vmem:[#allocation6 + $0x6c] sm:$0xf]
    %v1180 = vld [vmem:[#allocation6 + $0x70] sm:$0xff]
    %v1181 = vld [vmem:[#allocation6 + $0x78] sm:$0xff]
    %v1182 = vld [vmem:[#allocation6 + $0x80] sm:$0xff]
    %v1183 = vld [vmem:[#allocation6 + $0x88] sm:$0xf]
    %v1184 = vld [vmem:[#allocation6 + $0x8c] sm:$0xff]
    %v1185 = vld [vmem:[#allocation6 + $0x94] sm:$0xff]
    %v1186 = vld [vmem:[#allocation6 + $0x9c] sm:$0xff]
    %v1187 = vld [vmem:[#allocation6 + $0xa4] sm:$0xf]
    %v1188 = vld [vmem:[#allocation6 + $0xa8] sm:$0xff]
    %v1189 = vld [vmem:[#allocation6 + $0xb0] sm:$0xff]
    %v1190 = vld [vmem:[#allocation6 + $0xb8] sm:$0xff]
    %v1191 = vld [vmem:[#allocation6 + $0xc0] sm:$0xf]
    %v1192 = vld [vmem:[#allocation6 + $0xc4] sm:$0xff]
    %v1193 = vld [vmem:[#allocation6 + $0xcc] sm:$0xff]
    %v1194 = vld [vmem:[#allocation6 + $0xd4] sm:$0xff]
    %v1195 = vld [vmem:[#allocation6 + $0xdc] sm:$0xf]
    %v1196 = vld [vmem:[#allocation6 + $0xe0] sm:$0xff]
    %v1197 = vld [vmem:[#allocation6 + $0xe8] sm:$0xff]
    %v1198 = vld [vmem:[#allocation6 + $0xf0] sm:$0xff]
    %v1199 = vld [vmem:[#allocation6 + $0xf8] sm:$0xf]
    %v1200 = vld [vmem:[#allocation6 + $0xfc] sm:$0xff]
    %v1201 = vld [vmem:[#allocation6 + $0x104] sm:$0xff]
    %v1202 = vld [vmem:[#allocation6 + $0x10c] sm:$0xff]
    %v1203 = vld [vmem:[#allocation6 + $0x114] sm:$0xf]
    %v1204 = vld [vmem:[#allocation6 + $0x118] sm:$0xff]
    %v1205 = vld [vmem:[#allocation6 + $0x120] sm:$0xff]
    %v1206 = vld [vmem:[#allocation6 + $0x128] sm:$0xff]
    %v1207 = vld [vmem:[#allocation6 + $0x130] sm:$0xf]
    %v1208 = vld [vmem:[#allocation6 + $0x134] sm:$0xff]
    %v1209 = vld [vmem:[#allocation6 + $0x13c] sm:$0xff]
    %v1210 = vld [vmem:[#allocation6 + $0x144] sm:$0xff]
    %v1211 = vld [vmem:[#allocation6 + $0x14c] sm:$0xf]
    %v1212 = vld [vmem:[#allocation6 + $0x150] sm:$0xff]
    %v1213 = vld [vmem:[#allocation6 + $0x158] sm:$0xff]
    %v1214 = vld [vmem:[#allocation6 + $0x160] sm:$0xff]
    %v1215 = vld [vmem:[#allocation6 + $0x168] sm:$0xf]
    %v1216 = vld [vmem:[#allocation6 + $0x16c] sm:$0xff]
    %v1217 = vld [vmem:[#allocation6 + $0x174] sm:$0xff]
    %v1218 = vld [vmem:[#allocation6 + $0x17c] sm:$0xff]
    %v1219 = vld [vmem:[#allocation6 + $0x184] sm:$0xf]
    %v1220 = vld [vmem:[#allocation6 + $0x188] sm:$0xff]
    %v1221 = vld [vmem:[#allocation6 + $0x190] sm:$0xff]
    %v1222 = vld [vmem:[#allocation6 + $0x198] sm:$0xff]
    %v1223 = vld [vmem:[#allocation6 + $0x1a0] sm:$0xf]
    %v1224 = vld [vmem:[#allocation6 + $0x1a4] sm:$0xff]
    %v1225 = vld [vmem:[#allocation6 + $0x1ac] sm:$0xff]
    %v1226 = vld [vmem:[#allocation6 + $0x1b4] sm:$0xff]
    %v1227 = vld [vmem:[#allocation6 + $0x1bc] sm:$0xf]
    %v1228 = vld [vmem:[#allocation6 + $0x1c0] sm:$0xff]
    %v1229 = vld [vmem:[#allocation6 + $0x1c8] sm:$0xff]
    %v1230 = vld [vmem:[#allocation6 + $0x1d0] sm:$0xff]
    %v1231 = vld [vmem:[#allocation6 + $0x1d8] sm:$0xf]
    %v1232 = vld [vmem:[#allocation6 + $0x1dc] sm:$0xff]
    %v1233 = vld [vmem:[#allocation6 + $0x1e4] sm:$0xff]
    %v1234 = vld [vmem:[#allocation6 + $0x1ec] sm:$0xff]
    %v1235 = vld [vmem:[#allocation6 + $0x1f4] sm:$0xf]
    %v1236 = vld [vmem:[#allocation6 + $0x1f8] sm:$0xff]
    %v1237 = vld [vmem:[#allocation6 + $0x200] sm:$0xff]
    %v1238 = vld [vmem:[#allocation6 + $0x208] sm:$0xff]
    %v1239 = vld [vmem:[#allocation6 + $0x210] sm:$0xf]
    %v1240 = vld [vmem:[#allocation6 + $0x214] sm:$0xff]
    %v1241 = vld [vmem:[#allocation6 + $0x21c] sm:$0xff]
    %v1242 = vld [vmem:[#allocation6 + $0x224] sm:$0xff]
    %v1243 = vld [vmem:[#allocation6 + $0x22c] sm:$0xf]
    %v1244 = vld [vmem:[#allocation6 + $0x230] sm:$0xff]
    %v1245 = vld [vmem:[#allocation6 + $0x238] sm:$0xff]
    %v1246 = vld [vmem:[#allocation6 + $0x240] sm:$0xff]
    %v1247 = vld [vmem:[#allocation6 + $0x248] sm:$0xf]
    %v1248 = vld [vmem:[#allocation6 + $0x24c] sm:$0xff]
    %v1249 = vld [vmem:[#allocation6 + $0x254] sm:$0xff]
    %v1250 = vld [vmem:[#allocation6 + $0x25c] sm:$0xff]
    %v1251 = vld [vmem:[#allocation6 + $0x264] sm:$0xf]
    %v1252 = vld [vmem:[#allocation6 + $0x268] sm:$0xff]
    %v1253 = vld [vmem:[#allocation6 + $0x270] sm:$0xff]
    %v1254 = vld [vmem:[#allocation6 + $0x278] sm:$0xff]
    %v1255 = vld [vmem:[#allocation6 + $0x280] sm:$0xf]
    %v1256 = vld [vmem:[#allocation6 + $0x284] sm:$0xff]
    %v1257 = vld [vmem:[#allocation6 + $0x28c] sm:$0xff]
    %v1258 = vld [vmem:[#allocation6 + $0x294] sm:$0xff]
    %v1259 = vld [vmem:[#allocation6 + $0x29c] sm:$0xf]
    %v1260 = vld [vmem:[#allocation6 + $0x2a0] sm:$0xff]
    %v1261 = vld [vmem:[#allocation6 + $0x2a8] sm:$0xff]
    %v1262 = vld [vmem:[#allocation6 + $0x2b0] sm:$0xff]
    %v1263 = vld [vmem:[#allocation6 + $0x2b8] sm:$0xf]
    %v1264 = vld [vmem:[#allocation6 + $0x2bc] sm:$0xff]
    %v1265 = vld [vmem:[#allocation6 + $0x2c4] sm:$0xff]
    %v1266 = vld [vmem:[#allocation6 + $0x2cc] sm:$0xff]
    %v1267 = vld [vmem:[#allocation6 + $0x2d4] sm:$0xf]
    %v1268 = vld [vmem:[#allocation6 + $0x2d8] sm:$0xff]
    %v1269 = vld [vmem:[#allocation6 + $0x2e0] sm:$0xff]
    %v1270 = vld [vmem:[#allocation6 + $0x2e8] sm:$0xff]
    %v1271 = vld [vmem:[#allocation6 + $0x2f0] sm:$0xf]
    %v1272 = vld [vmem:[#allocation6 + $0x2f4] sm:$0xff]
    %v1273 = vld [vmem:[#allocation6 + $0x2fc] sm:$0xff]
    %v1274 = vld [vmem:[#allocation6 + $0x304] sm:$0xff]
    %v1275 = vld [vmem:[#allocation6 + $0x30c] sm:$0xf]
    %v1276 = vld [vmem:[#allocation6 + $0x310] sm:$0xff]
    %v1277 = vld [vmem:[#allocation6 + $0x318] sm:$0xff]
    %v1278 = vld [vmem:[#allocation6 + $0x320] sm:$0xff]
    %v1279 = vld [vmem:[#allocation6 + $0x328] sm:$0xf]
    %v1280 = vld [vmem:[#allocation6 + $0x32c] sm:$0xff]
    %v1281 = vld [vmem:[#allocation6 + $0x334] sm:$0xff]
    %v1282 = vld [vmem:[#allocation6 + $0x33c] sm:$0xff]
    %v1283 = vld [vmem:[#allocation6 + $0x344] sm:$0xf]
    %v1284 = vld [vmem:[#allocation6 + $0x348] sm:$0xff]
    %v1285 = vld [vmem:[#allocation6 + $0x350] sm:$0xff]
    %v1286 = vld [vmem:[#allocation6 + $0x358] sm:$0xff]
    %v1287 = vld [vmem:[#allocation6 + $0x360] sm:$0xf]
    %v1288 = vld [vmem:[#allocation6 + $0x364] sm:$0xff]
    %v1289 = vld [vmem:[#allocation6 + $0x36c] sm:$0xff]
    %v1290 = vld [vmem:[#allocation6 + $0x374] sm:$0xff]
    %v1291 = vld [vmem:[#allocation6 + $0x37c] sm:$0xf]
    %v1292 = vld [vmem:[#allocation6 + $0x380] sm:$0xff]
    %v1293 = vld [vmem:[#allocation6 + $0x388] sm:$0xff]
    %v1294 = vld [vmem:[#allocation6 + $0x390] sm:$0xff]
    %v1295 = vld [vmem:[#allocation6 + $0x398] sm:$0xf]
    %v1296 = vld [vmem:[#allocation6 + $0x39c] sm:$0xff]
    %v1297 = vld [vmem:[#allocation6 + $0x3a4] sm:$0xff]
    %v1298 = vld [vmem:[#allocation6 + $0x3ac] sm:$0xff]
    %v1299 = vld [vmem:[#allocation6 + $0x3b4] sm:$0xf]
    %v1300 = vld [vmem:[#allocation6 + $0x3b8] sm:$0xff]
    %v1301 = vld [vmem:[#allocation6 + $0x3c0] sm:$0xff]
    %v1302 = vld [vmem:[#allocation6 + $0x3c8] sm:$0xff]
    %v1303 = vld [vmem:[#allocation6 + $0x3d0] sm:$0xf]
    %v1304 = vld [vmem:[#allocation6 + $0x3d4] sm:$0xff]
    %v1305 = vld [vmem:[#allocation6 + $0x3dc] sm:$0xff]
    %v1306 = vld [vmem:[#allocation6 + $0x3e4] sm:$0xff]
    %v1307 = vld [vmem:[#allocation6 + $0x3ec] sm:$0xf]
    %v1308 = vld [vmem:[#allocation6 + $0x3f0] sm:$0xff]
    %v1309 = vld [vmem:[#allocation6 + $0x3f8] sm:$0xff]
    %v1310 = vld [vmem:[#allocation6 + $0x400] sm:$0xff]
    %v1311 = vld [vmem:[#allocation6 + $0x408] sm:$0xf]
    %v1312 = vld [vmem:[#allocation6 + $0x40c] sm:$0xff]
    %v1313 = vld [vmem:[#allocation6 + $0x414] sm:$0xff]
    %v1314 = vld [vmem:[#allocation6 + $0x41c] sm:$0xff]
    %v1315 = vld [vmem:[#allocation6 + $0x424] sm:$0xf]
    %v1316 = vld [vmem:[#allocation6 + $0x428] sm:$0xff]
    %v1317 = vld [vmem:[#allocation6 + $0x430] sm:$0xff]
    %v1318 = vld [vmem:[#allocation6 + $0x438] sm:$0xff]
    %v1319 = vld [vmem:[#allocation6 + $0x440] sm:$0xf]
    %v1320 = vld [vmem:[#allocation6 + $0x444] sm:$0xff]
    %v1321 = vld [vmem:[#allocation6 + $0x44c] sm:$0xff]
    %v1322 = vld [vmem:[#allocation6 + $0x454] sm:$0xff]
    %v1323 = vld [vmem:[#allocation6 + $0x45c] sm:$0xf]
    %v1324 = vld [vmem:[#allocation6 + $0x460] sm:$0xff]
    %v1325 = vld [vmem:[#allocation6 + $0x468] sm:$0xff]
    %v1326 = vld [vmem:[#allocation6 + $0x470] sm:$0xff]
    %v1327 = vld [vmem:[#allocation6 + $0x478] sm:$0xf]
    %v1328 = vld [vmem:[#allocation6 + $0x47c] sm:$0xff]
    %v1329 = vld [vmem:[#allocation6 + $0x484] sm:$0xff]
    %v1330 = vld [vmem:[#allocation6 + $0x48c] sm:$0xff]
    %v1331 = vld [vmem:[#allocation6 + $0x494] sm:$0xf]
    %v1332 = vld [vmem:[#allocation6 + $0x498] sm:$0xff]
    %v1333 = vld [vmem:[#allocation6 + $0x4a0] sm:$0xff]
    %v1334 = vld [vmem:[#allocation6 + $0x4a8] sm:$0xff]
    %v1335 = vld [vmem:[#allocation6 + $0x4b0] sm:$0xf]
    %v1336 = vld [vmem:[#allocation6 + $0x4b4] sm:$0xff]
    %v1337 = vld [vmem:[#allocation6 + $0x4bc] sm:$0xff]
    %v1338 = vld [vmem:[#allocation6 + $0x4c4] sm:$0xff]
    %v1339 = vld [vmem:[#allocation6 + $0x4cc] sm:$0xf]
    %v1340 = vld [vmem:[#allocation6 + $0x4d0] sm:$0xff]
    %v1341 = vld [vmem:[#allocation6 + $0x4d8] sm:$0xff]
    %v1342 = vld [vmem:[#allocation6 + $0x4e0] sm:$0xff]
    %v1343 = vld [vmem:[#allocation6 + $0x4e8] sm:$0xf]
    %v1344 = vld [vmem:[#allocation6 + $0x4ec] sm:$0xff]
    %v1345 = vld [vmem:[#allocation6 + $0x4f4] sm:$0xff]
    %v1346 = vld [vmem:[#allocation6 + $0x4fc] sm:$0xff]
    %v1347 = vld [vmem:[#allocation6 + $0x504] sm:$0xf]
    %v1348 = vld [vmem:[#allocation6 + $0x508] sm:$0xff]
    %v1349 = vld [vmem:[#allocation6 + $0x510] sm:$0xff]
    %v1350 = vld [vmem:[#allocation6 + $0x518] sm:$0xff]
    %v1351 = vld [vmem:[#allocation6 + $0x520] sm:$0xf]
    %v1352 = vld [vmem:[#allocation6 + $0x524] sm:$0xff]
    %v1353 = vld [vmem:[#allocation6 + $0x52c] sm:$0xff]
    %v1354 = vld [vmem:[#allocation6 + $0x534] sm:$0xff]
    %v1355 = vld [vmem:[#allocation6 + $0x53c] sm:$0xf]
    %v1356 = vld [vmem:[#allocation6 + $0x540] sm:$0xff]
    %v1357 = vld [vmem:[#allocation6 + $0x548] sm:$0xff]
    %v1358 = vld [vmem:[#allocation6 + $0x550] sm:$0xff]
    %v1359 = vld [vmem:[#allocation6 + $0x558] sm:$0xf]
    %v1360 = vld [vmem:[#allocation6 + $0x55c] sm:$0xff]
    %v1361 = vld [vmem:[#allocation6 + $0x564] sm:$0xff]
    %v1362 = vld [vmem:[#allocation6 + $0x56c] sm:$0xff]
    %v1363 = vld [vmem:[#allocation6 + $0x574] sm:$0xf]
    %v1364 = vld [vmem:[#allocation6 + $0x578] sm:$0xff]
    %v1365 = vld [vmem:[#allocation6 + $0x580] sm:$0xff]
    %v1366 = vld [vmem:[#allocation6 + $0x588] sm:$0xff]
    %v1367 = vld [vmem:[#allocation6 + $0x590] sm:$0xf]
    %v1368 = vld [vmem:[#allocation6 + $0x594] sm:$0xff]
    %v1369 = vld [vmem:[#allocation6 + $0x59c] sm:$0xff]
    %v1370 = vld [vmem:[#allocation6 + $0x5a4] sm:$0xff]
    %v1371 = vld [vmem:[#allocation6 + $0x5ac] sm:$0xf]
    %v1372 = vld [vmem:[#allocation6 + $0x5b0] sm:$0xff]
    %v1373 = vld [vmem:[#allocation6 + $0x5b8] sm:$0xff]
    %v1374 = vld [vmem:[#allocation6 + $0x5c0] sm:$0xff]
    %v1375 = vld [vmem:[#allocation6 + $0x5c8] sm:$0xf]
    %v1376 = vld [vmem:[#allocation6 + $0x5cc] sm:$0xff]
    %v1377 = vld [vmem:[#allocation6 + $0x5d4] sm:$0xff]
    %v1378 = vld [vmem:[#allocation6 + $0x5dc] sm:$0xff]
    %v1379 = vld [vmem:[#allocation6 + $0x5e4] sm:$0xf]
    %v1380 = vld [vmem:[#allocation6 + $0x5e8] sm:$0xff]
    %v1381 = vld [vmem:[#allocation6 + $0x5f0] sm:$0xff]
    %v1382 = vld [vmem:[#allocation6 + $0x5f8] sm:$0xff]
    %v1383 = vld [vmem:[#allocation6 + $0x600] sm:$0xf]
    %v1384 = vld [vmem:[#allocation6 + $0x604] sm:$0xff]
    %v1385 = vld [vmem:[#allocation6 + $0x60c] sm:$0xff]
    %v1386 = vld [vmem:[#allocation6 + $0x614] sm:$0xff]
    %v1387 = vld [vmem:[#allocation6 + $0x61c] sm:$0xf]
    %v1388 = vld [vmem:[#allocation6 + $0x620] sm:$0xff]
    %v1389 = vld [vmem:[#allocation6 + $0x628] sm:$0xff]
    %v1390 = vld [vmem:[#allocation6 + $0x630] sm:$0xff]
    %v1391 = vld [vmem:[#allocation6 + $0x638] sm:$0xf]
    %v1392 = vld [vmem:[#allocation6 + $0x63c] sm:$0xff]
    %v1393 = vld [vmem:[#allocation6 + $0x644] sm:$0xff]
    %v1394 = vld [vmem:[#allocation6 + $0x64c] sm:$0xff]
    %v1395 = vld [vmem:[#allocation6 + $0x654] sm:$0xf]
    %v1396 = vld [vmem:[#allocation6 + $0x658] sm:$0xff]
    %v1397 = vld [vmem:[#allocation6 + $0x660] sm:$0xff]
    %v1398 = vld [vmem:[#allocation6 + $0x668] sm:$0xff]
    %v1399 = vld [vmem:[#allocation6 + $0x670] sm:$0xf]
    %v1400 = vld [vmem:[#allocation6 + $0x674] sm:$0xff]
    %v1401 = vld [vmem:[#allocation6 + $0x67c] sm:$0xff]
    %v1402 = vld [vmem:[#allocation6 + $0x684] sm:$0xff]
    %v1403 = vld [vmem:[#allocation6 + $0x68c] sm:$0xf]
    %v1404 = vld [vmem:[#allocation6 + $0x690] sm:$0xff]
    %v1405 = vld [vmem:[#allocation6 + $0x698] sm:$0xff]
    %v1406 = vld [vmem:[#allocation6 + $0x6a0] sm:$0xff]
    %v1407 = vld [vmem:[#allocation6 + $0x6a8] sm:$0xf]
    %v1408 = vld [vmem:[#allocation6 + $0x6ac] sm:$0xff]
    %v1409 = vld [vmem:[#allocation6 + $0x6b4] sm:$0xff]
    %v1410 = vld [vmem:[#allocation6 + $0x6bc] sm:$0xff]
    %v1411 = vld [vmem:[#allocation6 + $0x6c4] sm:$0xf]
    %v1412 = vld [vmem:[#allocation6 + $0x6c8] sm:$0xff]
    %v1413 = vld [vmem:[#allocation6 + $0x6d0] sm:$0xff]
    %v1414 = vld [vmem:[#allocation6 + $0x6d8] sm:$0xff]
    %v1415 = vld [vmem:[#allocation6 + $0x6e0] sm:$0xf]
    %v1416 = vld [vmem:[#allocation6 + $0x6e4] sm:$0xff]
    %v1417 = vld [vmem:[#allocation6 + $0x6ec] sm:$0xff]
    %v1418 = vld [vmem:[#allocation6 + $0x6f4] sm:$0xff]
    %v1419 = vld [vmem:[#allocation6 + $0x6fc] sm:$0xf]
    %s1420 = scalar_lea.vmem [#allocation2], 4
    %v1421 = vld [vmem:[%s1420] ss:$8 sm:$0xf]
    %v1422 = vld [vmem:[%s1420] ss:$8 sm:$0xf0]
    %v1423 = vor.u32 %v1421, %v1422
    %v1425 = vlaneseq
    %v1426 = vshrl.u32 %v1425, 7
    %v1427 = vsub.s32 0, %v1426
    %v1428 = vrot.slane %v1423, %v1427
    %v1429 = vlaneseq
    %v1430 = vshrl.u32 %v1429, 7
    %v1431 = vsub.s32 1, %v1430
    %v1432 = vrot.slane %v1423, %v1431
    %v1433 = vlaneseq
    %v1434 = vshrl.u32 %v1433, 7
    %v1435 = vsub.s32 2, %v1434
    %v1436 = vrot.slane %v1423, %v1435
    %v1437 = vlaneseq
    %v1438 = vshrl.u32 %v1437, 7
    %v1439 = vsub.s32 3, %v1438
    %v1440 = vrot.slane %v1423, %v1439
    %v1441 = vlaneseq
    %v1442 = vshrl.u32 %v1441, 7
    %v1443 = vsub.s32 4, %v1442
    %v1444 = vrot.slane %v1423, %v1443
    %v1445 = vlaneseq
    %v1446 = vshrl.u32 %v1445, 7
    %v1447 = vsub.s32 5, %v1446
    %v1448 = vrot.slane %v1423, %v1447
    %v1449 = vlaneseq
    %v1450 = vshrl.u32 %v1449, 7
    %v1451 = vsub.s32 6, %v1450
    %v1452 = vrot.slane %v1423, %v1451
    %v1716 = vunpack.c.l.b16 %v1164
    %v1717 = vunpack.c.h.b16 %v1164
    %v1718 = vunpack.c.l.b16 %v1165
    %v1719 = vunpack.c.h.b16 %v1165
    %v1720 = vunpack.c.l.b16 %v1166
    %v1721 = vunpack.c.h.b16 %v1166
    %v1722 = vunpack.c.l.b16 %v1167
    %v1723 = vunpack.c.l.b16 %v1168
    %v1724 = vunpack.c.h.b16 %v1168
    %v1725 = vunpack.c.l.b16 %v1169
    %v1726 = vunpack.c.h.b16 %v1169
    %v1727 = vunpack.c.l.b16 %v1170
    %v1728 = vunpack.c.h.b16 %v1170
    %v1729 = vunpack.c.l.b16 %v1171
    %v1730 = vunpack.c.l.b16 %v1172
    %v1731 = vunpack.c.h.b16 %v1172
    %v1732 = vunpack.c.l.b16 %v1173
    %v1733 = vunpack.c.h.b16 %v1173
    %v1734 = vunpack.c.l.b16 %v1174
    %v1735 = vunpack.c.h.b16 %v1174
    %v1736 = vunpack.c.l.b16 %v1175
    %v1737 = vunpack.c.l.b16 %v1176
    %v1738 = vunpack.c.h.b16 %v1176
    %v1739 = vunpack.c.l.b16 %v1177
    %v1740 = vunpack.c.h.b16 %v1177
    %v1741 = vunpack.c.l.b16 %v1178
    %v1742 = vunpack.c.h.b16 %v1178
    %v1743 = vunpack.c.l.b16 %v1179
    %v1744 = vunpack.c.l.b16 %v1180
    %v1745 = vunpack.c.h.b16 %v1180
    %v1746 = vunpack.c.l.b16 %v1181
    %v1747 = vunpack.c.h.b16 %v1181
    %v1748 = vunpack.c.l.b16 %v1182
    %v1749 = vunpack.c.h.b16 %v1182
    %v1750 = vunpack.c.l.b16 %v1183
    %v1751 = vunpack.c.l.b16 %v1184
    %v1752 = vunpack.c.h.b16 %v1184
    %v1753 = vunpack.c.l.b16 %v1185
    %v1754 = vunpack.c.h.b16 %v1185
    %v1755 = vunpack.c.l.b16 %v1186
    %v1756 = vunpack.c.h.b16 %v1186
    %v1757 = vunpack.c.l.b16 %v1187
    %v1758 = vunpack.c.l.b16 %v1188
    %v1759 = vunpack.c.h.b16 %v1188
    %v1760 = vunpack.c.l.b16 %v1189
    %v1761 = vunpack.c.h.b16 %v1189
    %v1762 = vunpack.c.l.b16 %v1190
    %v1763 = vunpack.c.h.b16 %v1190
    %v1764 = vunpack.c.l.b16 %v1191
    %v1765 = vunpack.c.l.b16 %v1192
    %v1766 = vunpack.c.h.b16 %v1192
    %v1767 = vunpack.c.l.b16 %v1193
    %v1768 = vunpack.c.h.b16 %v1193
    %v1769 = vunpack.c.l.b16 %v1194
    %v1770 = vunpack.c.h.b16 %v1194
    %v1771 = vunpack.c.l.b16 %v1195
    %v1772 = vunpack.c.l.b16 %v1196
    %v1773 = vunpack.c.h.b16 %v1196
    %v1774 = vunpack.c.l.b16 %v1197
    %v1775 = vunpack.c.h.b16 %v1197
    %v1776 = vunpack.c.l.b16 %v1198
    %v1777 = vunpack.c.h.b16 %v1198
    %v1778 = vunpack.c.l.b16 %v1199
    %v1779 = vunpack.c.l.b16 %v1200
    %v1780 = vunpack.c.h.b16 %v1200
    %v1781 = vunpack.c.l.b16 %v1201
    %v1782 = vunpack.c.h.b16 %v1201
    %v1783 = vunpack.c.l.b16 %v1202
    %v1784 = vunpack.c.h.b16 %v1202
    %v1785 = vunpack.c.l.b16 %v1203
    %v1786 = vunpack.c.l.b16 %v1204
    %v1787 = vunpack.c.h.b16 %v1204
    %v1788 = vunpack.c.l.b16 %v1205
    %v1789 = vunpack.c.h.b16 %v1205
    %v1790 = vunpack.c.l.b16 %v1206
    %v1791 = vunpack.c.h.b16 %v1206
    %v1792 = vunpack.c.l.b16 %v1207
    %v1793 = vunpack.c.l.b16 %v1208
    %v1794 = vunpack.c.h.b16 %v1208
    %v1795 = vunpack.c.l.b16 %v1209
    %v1796 = vunpack.c.h.b16 %v1209
    %v1797 = vunpack.c.l.b16 %v1210
    %v1798 = vunpack.c.h.b16 %v1210
    %v1799 = vunpack.c.l.b16 %v1211
    %v1800 = vunpack.c.l.b16 %v1212
    %v1801 = vunpack.c.h.b16 %v1212
    %v1802 = vunpack.c.l.b16 %v1213
    %v1803 = vunpack.c.h.b16 %v1213
    %v1804 = vunpack.c.l.b16 %v1214
    %v1805 = vunpack.c.h.b16 %v1214
    %v1806 = vunpack.c.l.b16 %v1215
    %v1807 = vunpack.c.l.b16 %v1216
    %v1808 = vunpack.c.h.b16 %v1216
    %v1809 = vunpack.c.l.b16 %v1217
    %v1810 = vunpack.c.h.b16 %v1217
    %v1811 = vunpack.c.l.b16 %v1218
    %v1812 = vunpack.c.h.b16 %v1218
    %v1813 = vunpack.c.l.b16 %v1219
    %v1814 = vunpack.c.l.b16 %v1220
    %v1815 = vunpack.c.h.b16 %v1220
    %v1816 = vunpack.c.l.b16 %v1221
    %v1817 = vunpack.c.h.b16 %v1221
    %v1818 = vunpack.c.l.b16 %v1222
    %v1819 = vunpack.c.h.b16 %v1222
    %v1820 = vunpack.c.l.b16 %v1223
    %v1821 = vunpack.c.l.b16 %v1224
    %v1822 = vunpack.c.h.b16 %v1224
    %v1823 = vunpack.c.l.b16 %v1225
    %v1824 = vunpack.c.h.b16 %v1225
    %v1825 = vunpack.c.l.b16 %v1226
    %v1826 = vunpack.c.h.b16 %v1226
    %v1827 = vunpack.c.l.b16 %v1227
    %v1828 = vunpack.c.l.b16 %v1228
    %v1829 = vunpack.c.h.b16 %v1228
    %v1830 = vunpack.c.l.b16 %v1229
    %v1831 = vunpack.c.h.b16 %v1229
    %v1832 = vunpack.c.l.b16 %v1230
    %v1833 = vunpack.c.h.b16 %v1230
    %v1834 = vunpack.c.l.b16 %v1231
    %v1835 = vunpack.c.l.b16 %v1232
    %v1836 = vunpack.c.h.b16 %v1232
    %v1837 = vunpack.c.l.b16 %v1233
    %v1838 = vunpack.c.h.b16 %v1233
    %v1839 = vunpack.c.l.b16 %v1234
    %v1840 = vunpack.c.h.b16 %v1234
    %v1841 = vunpack.c.l.b16 %v1235
    %v1842 = vunpack.c.l.b16 %v1236
    %v1843 = vunpack.c.h.b16 %v1236
    %v1844 = vunpack.c.l.b16 %v1237
    %v1845 = vunpack.c.h.b16 %v1237
    %v1846 = vunpack.c.l.b16 %v1238
    %v1847 = vunpack.c.h.b16 %v1238
    %v1848 = vunpack.c.l.b16 %v1239
    %v1849 = vunpack.c.l.b16 %v1240
    %v1850 = vunpack.c.h.b16 %v1240
    %v1851 = vunpack.c.l.b16 %v1241
    %v1852 = vunpack.c.h.b16 %v1241
    %v1853 = vunpack.c.l.b16 %v1242
    %v1854 = vunpack.c.h.b16 %v1242
    %v1855 = vunpack.c.l.b16 %v1243
    %v1856 = vunpack.c.l.b16 %v1244
    %v1857 = vunpack.c.h.b16 %v1244
    %v1858 = vunpack.c.l.b16 %v1245
    %v1859 = vunpack.c.h.b16 %v1245
    %v1860 = vunpack.c.l.b16 %v1246
    %v1861 = vunpack.c.h.b16 %v1246
    %v1862 = vunpack.c.l.b16 %v1247
    %v1863 = vunpack.c.l.b16 %v1248
    %v1864 = vunpack.c.h.b16 %v1248
    %v1865 = vunpack.c.l.b16 %v1249
    %v1866 = vunpack.c.h.b16 %v1249
    %v1867 = vunpack.c.l.b16 %v1250
    %v1868 = vunpack.c.h.b16 %v1250
    %v1869 = vunpack.c.l.b16 %v1251
    %v1870 = vunpack.c.l.b16 %v1252
    %v1871 = vunpack.c.h.b16 %v1252
    %v1872 = vunpack.c.l.b16 %v1253
    %v1873 = vunpack.c.h.b16 %v1253
    %v1874 = vunpack.c.l.b16 %v1254
    %v1875 = vunpack.c.h.b16 %v1254
    %v1876 = vunpack.c.l.b16 %v1255
    %v1877 = vunpack.c.l.b16 %v1256
    %v1878 = vunpack.c.h.b16 %v1256
    %v1879 = vunpack.c.l.b16 %v1257
    %v1880 = vunpack.c.h.b16 %v1257
    %v1881 = vunpack.c.l.b16 %v1258
    %v1882 = vunpack.c.h.b16 %v1258
    %v1883 = vunpack.c.l.b16 %v1259
    %v1884 = vunpack.c.l.b16 %v1260
    %v1885 = vunpack.c.h.b16 %v1260
    %v1886 = vunpack.c.l.b16 %v1261
    %v1887 = vunpack.c.h.b16 %v1261
    %v1888 = vunpack.c.l.b16 %v1262
    %v1889 = vunpack.c.h.b16 %v1262
    %v1890 = vunpack.c.l.b16 %v1263
    %v1891 = vunpack.c.l.b16 %v1264
    %v1892 = vunpack.c.h.b16 %v1264
    %v1893 = vunpack.c.l.b16 %v1265
    %v1894 = vunpack.c.h.b16 %v1265
    %v1895 = vunpack.c.l.b16 %v1266
    %v1896 = vunpack.c.h.b16 %v1266
    %v1897 = vunpack.c.l.b16 %v1267
    %v1898 = vunpack.c.l.b16 %v1268
    %v1899 = vunpack.c.h.b16 %v1268
    %v1900 = vunpack.c.l.b16 %v1269
    %v1901 = vunpack.c.h.b16 %v1269
    %v1902 = vunpack.c.l.b16 %v1270
    %v1903 = vunpack.c.h.b16 %v1270
    %v1904 = vunpack.c.l.b16 %v1271
    %v1905 = vunpack.c.l.b16 %v1272
    %v1906 = vunpack.c.h.b16 %v1272
    %v1907 = vunpack.c.l.b16 %v1273
    %v1908 = vunpack.c.h.b16 %v1273
    %v1909 = vunpack.c.l.b16 %v1274
    %v1910 = vunpack.c.h.b16 %v1274
    %v1911 = vunpack.c.l.b16 %v1275
    %v1912 = vunpack.c.l.b16 %v1276
    %v1913 = vunpack.c.h.b16 %v1276
    %v1914 = vunpack.c.l.b16 %v1277
    %v1915 = vunpack.c.h.b16 %v1277
    %v1916 = vunpack.c.l.b16 %v1278
    %v1917 = vunpack.c.h.b16 %v1278
    %v1918 = vunpack.c.l.b16 %v1279
    %v1919 = vunpack.c.l.b16 %v1280
    %v1920 = vunpack.c.h.b16 %v1280
    %v1921 = vunpack.c.l.b16 %v1281
    %v1922 = vunpack.c.h.b16 %v1281
    %v1923 = vunpack.c.l.b16 %v1282
    %v1924 = vunpack.c.h.b16 %v1282
    %v1925 = vunpack.c.l.b16 %v1283
    %v1926 = vunpack.c.l.b16 %v1284
    %v1927 = vunpack.c.h.b16 %v1284
    %v1928 = vunpack.c.l.b16 %v1285
    %v1929 = vunpack.c.h.b16 %v1285
    %v1930 = vunpack.c.l.b16 %v1286
    %v1931 = vunpack.c.h.b16 %v1286
    %v1932 = vunpack.c.l.b16 %v1287
    %v1933 = vunpack.c.l.b16 %v1288
    %v1934 = vunpack.c.h.b16 %v1288
    %v1935 = vunpack.c.l.b16 %v1289
    %v1936 = vunpack.c.h.b16 %v1289
    %v1937 = vunpack.c.l.b16 %v1290
    %v1938 = vunpack.c.h.b16 %v1290
    %v1939 = vunpack.c.l.b16 %v1291
    %v1940 = vunpack.c.l.b16 %v1292
    %v1941 = vunpack.c.h.b16 %v1292
    %v1942 = vunpack.c.l.b16 %v1293
    %v1943 = vunpack.c.h.b16 %v1293
    %v1944 = vunpack.c.l.b16 %v1294
    %v1945 = vunpack.c.h.b16 %v1294
    %v1946 = vunpack.c.l.b16 %v1295
    %v1947 = vunpack.c.l.b16 %v1296
    %v1948 = vunpack.c.h.b16 %v1296
    %v1949 = vunpack.c.l.b16 %v1297
    %v1950 = vunpack.c.h.b16 %v1297
    %v1951 = vunpack.c.l.b16 %v1298
    %v1952 = vunpack.c.h.b16 %v1298
    %v1953 = vunpack.c.l.b16 %v1299
    %v1954 = vunpack.c.l.b16 %v1300
    %v1955 = vunpack.c.h.b16 %v1300
    %v1956 = vunpack.c.l.b16 %v1301
    %v1957 = vunpack.c.h.b16 %v1301
    %v1958 = vunpack.c.l.b16 %v1302
    %v1959 = vunpack.c.h.b16 %v1302
    %v1960 = vunpack.c.l.b16 %v1303
    %v1961 = vunpack.c.l.b16 %v1304
    %v1962 = vunpack.c.h.b16 %v1304
    %v1963 = vunpack.c.l.b16 %v1305
    %v1964 = vunpack.c.h.b16 %v1305
    %v1965 = vunpack.c.l.b16 %v1306
    %v1966 = vunpack.c.h.b16 %v1306
    %v1967 = vunpack.c.l.b16 %v1307
    %v1968 = vunpack.c.l.b16 %v1308
    %v1969 = vunpack.c.h.b16 %v1308
    %v1970 = vunpack.c.l.b16 %v1309
    %v1971 = vunpack.c.h.b16 %v1309
    %v1972 = vunpack.c.l.b16 %v1310
    %v1973 = vunpack.c.h.b16 %v1310
    %v1974 = vunpack.c.l.b16 %v1311
    %v1975 = vunpack.c.l.b16 %v1312
    %v1976 = vunpack.c.h.b16 %v1312
    %v1977 = vunpack.c.l.b16 %v1313
    %v1978 = vunpack.c.h.b16 %v1313
    %v1979 = vunpack.c.l.b16 %v1314
    %v1980 = vunpack.c.h.b16 %v1314
    %v1981 = vunpack.c.l.b16 %v1315
    %v1982 = vunpack.c.l.b16 %v1316
    %v1983 = vunpack.c.h.b16 %v1316
    %v1984 = vunpack.c.l.b16 %v1317
    %v1985 = vunpack.c.h.b16 %v1317
    %v1986 = vunpack.c.l.b16 %v1318
    %v1987 = vunpack.c.h.b16 %v1318
    %v1988 = vunpack.c.l.b16 %v1319
    %v1989 = vunpack.c.l.b16 %v1320
    %v1990 = vunpack.c.h.b16 %v1320
    %v1991 = vunpack.c.l.b16 %v1321
    %v1992 = vunpack.c.h.b16 %v1321
    %v1993 = vunpack.c.l.b16 %v1322
    %v1994 = vunpack.c.h.b16 %v1322
    %v1995 = vunpack.c.l.b16 %v1323
    %v1996 = vunpack.c.l.b16 %v1324
    %v1997 = vunpack.c.h.b16 %v1324
    %v1998 = vunpack.c.l.b16 %v1325
    %v1999 = vunpack.c.h.b16 %v1325
    %v2000 = vunpack.c.l.b16 %v1326
    %v2001 = vunpack.c.h.b16 %v1326
    %v2002 = vunpack.c.l.b16 %v1327
    %v2003 = vunpack.c.l.b16 %v1328
    %v2004 = vunpack.c.h.b16 %v1328
    %v2005 = vunpack.c.l.b16 %v1329
    %v2006 = vunpack.c.h.b16 %v1329
    %v2007 = vunpack.c.l.b16 %v1330
    %v2008 = vunpack.c.h.b16 %v1330
    %v2009 = vunpack.c.l.b16 %v1331
    %v2010 = vunpack.c.l.b16 %v1332
    %v2011 = vunpack.c.h.b16 %v1332
    %v2012 = vunpack.c.l.b16 %v1333
    %v2013 = vunpack.c.h.b16 %v1333
    %v2014 = vunpack.c.l.b16 %v1334
    %v2015 = vunpack.c.h.b16 %v1334
    %v2016 = vunpack.c.l.b16 %v1335
    %v2017 = vunpack.c.l.b16 %v1336
    %v2018 = vunpack.c.h.b16 %v1336
    %v2019 = vunpack.c.l.b16 %v1337
    %v2020 = vunpack.c.h.b16 %v1337
    %v2021 = vunpack.c.l.b16 %v1338
    %v2022 = vunpack.c.h.b16 %v1338
    %v2023 = vunpack.c.l.b16 %v1339
    %v2024 = vunpack.c.l.b16 %v1340
    %v2025 = vunpack.c.h.b16 %v1340
    %v2026 = vunpack.c.l.b16 %v1341
    %v2027 = vunpack.c.h.b16 %v1341
    %v2028 = vunpack.c.l.b16 %v1342
    %v2029 = vunpack.c.h.b16 %v1342
    %v2030 = vunpack.c.l.b16 %v1343
    %v2031 = vunpack.c.l.b16 %v1344
    %v2032 = vunpack.c.h.b16 %v1344
    %v2033 = vunpack.c.l.b16 %v1345
    %v2034 = vunpack.c.h.b16 %v1345
    %v2035 = vunpack.c.l.b16 %v1346
    %v2036 = vunpack.c.h.b16 %v1346
    %v2037 = vunpack.c.l.b16 %v1347
    %v2038 = vunpack.c.l.b16 %v1348
    %v2039 = vunpack.c.h.b16 %v1348
    %v2040 = vunpack.c.l.b16 %v1349
    %v2041 = vunpack.c.h.b16 %v1349
    %v2042 = vunpack.c.l.b16 %v1350
    %v2043 = vunpack.c.h.b16 %v1350
    %v2044 = vunpack.c.l.b16 %v1351
    %v2045 = vunpack.c.l.b16 %v1352
    %v2046 = vunpack.c.h.b16 %v1352
    %v2047 = vunpack.c.l.b16 %v1353
    %v2048 = vunpack.c.h.b16 %v1353
    %v2049 = vunpack.c.l.b16 %v1354
    %v2050 = vunpack.c.h.b16 %v1354
    %v2051 = vunpack.c.l.b16 %v1355
    %v2052 = vunpack.c.l.b16 %v1356
    %v2053 = vunpack.c.h.b16 %v1356
    %v2054 = vunpack.c.l.b16 %v1357
    %v2055 = vunpack.c.h.b16 %v1357
    %v2056 = vunpack.c.l.b16 %v1358
    %v2057 = vunpack.c.h.b16 %v1358
    %v2058 = vunpack.c.l.b16 %v1359
    %v2059 = vunpack.c.l.b16 %v1360
    %v2060 = vunpack.c.h.b16 %v1360
    %v2061 = vunpack.c.l.b16 %v1361
    %v2062 = vunpack.c.h.b16 %v1361
    %v2063 = vunpack.c.l.b16 %v1362
    %v2064 = vunpack.c.h.b16 %v1362
    %v2065 = vunpack.c.l.b16 %v1363
    %v2066 = vunpack.c.l.b16 %v1364
    %v2067 = vunpack.c.h.b16 %v1364
    %v2068 = vunpack.c.l.b16 %v1365
    %v2069 = vunpack.c.h.b16 %v1365
    %v2070 = vunpack.c.l.b16 %v1366
    %v2071 = vunpack.c.h.b16 %v1366
    %v2072 = vunpack.c.l.b16 %v1367
    %v2073 = vunpack.c.l.b16 %v1368
    %v2074 = vunpack.c.h.b16 %v1368
    %v2075 = vunpack.c.l.b16 %v1369
    %v2076 = vunpack.c.h.b16 %v1369
    %v2077 = vunpack.c.l.b16 %v1370
    %v2078 = vunpack.c.h.b16 %v1370
    %v2079 = vunpack.c.l.b16 %v1371
    %v2080 = vunpack.c.l.b16 %v1372
    %v2081 = vunpack.c.h.b16 %v1372
    %v2082 = vunpack.c.l.b16 %v1373
    %v2083 = vunpack.c.h.b16 %v1373
    %v2084 = vunpack.c.l.b16 %v1374
    %v2085 = vunpack.c.h.b16 %v1374
    %v2086 = vunpack.c.l.b16 %v1375
    %v2087 = vunpack.c.l.b16 %v1376
    %v2088 = vunpack.c.h.b16 %v1376
    %v2089 = vunpack.c.l.b16 %v1377
    %v2090 = vunpack.c.h.b16 %v1377
    %v2091 = vunpack.c.l.b16 %v1378
    %v2092 = vunpack.c.h.b16 %v1378
    %v2093 = vunpack.c.l.b16 %v1379
    %v2094 = vunpack.c.l.b16 %v1380
    %v2095 = vunpack.c.h.b16 %v1380
    %v2096 = vunpack.c.l.b16 %v1381
    %v2097 = vunpack.c.h.b16 %v1381
    %v2098 = vunpack.c.l.b16 %v1382
    %v2099 = vunpack.c.h.b16 %v1382
    %v2100 = vunpack.c.l.b16 %v1383
    %v2101 = vunpack.c.l.b16 %v1384
    %v2102 = vunpack.c.h.b16 %v1384
    %v2103 = vunpack.c.l.b16 %v1385
    %v2104 = vunpack.c.h.b16 %v1385
    %v2105 = vunpack.c.l.b16 %v1386
    %v2106 = vunpack.c.h.b16 %v1386
    %v2107 = vunpack.c.l.b16 %v1387
    %v2108 = vunpack.c.l.b16 %v1388
    %v2109 = vunpack.c.h.b16 %v1388
    %v2110 = vunpack.c.l.b16 %v1389
    %v2111 = vunpack.c.h.b16 %v1389
    %v2112 = vunpack.c.l.b16 %v1390
    %v2113 = vunpack.c.h.b16 %v1390
    %v2114 = vunpack.c.l.b16 %v1391
    %v2115 = vunpack.c.l.b16 %v1392
    %v2116 = vunpack.c.h.b16 %v1392
    %v2117 = vunpack.c.l.b16 %v1393
    %v2118 = vunpack.c.h.b16 %v1393
    %v2119 = vunpack.c.l.b16 %v1394
    %v2120 = vunpack.c.h.b16 %v1394
    %v2121 = vunpack.c.l.b16 %v1395
    %v2122 = vunpack.c.l.b16 %v1396
    %v2123 = vunpack.c.h.b16 %v1396
    %v2124 = vunpack.c.l.b16 %v1397
    %v2125 = vunpack.c.h.b16 %v1397
    %v2126 = vunpack.c.l.b16 %v1398
    %v2127 = vunpack.c.h.b16 %v1398
    %v2128 = vunpack.c.l.b16 %v1399
    %v2129 = vunpack.c.l.b16 %v1400
    %v2130 = vunpack.c.h.b16 %v1400
    %v2131 = vunpack.c.l.b16 %v1401
    %v2132 = vunpack.c.h.b16 %v1401
    %v2133 = vunpack.c.l.b16 %v1402
    %v2134 = vunpack.c.h.b16 %v1402
    %v2135 = vunpack.c.l.b16 %v1403
    %v2136 = vunpack.c.l.b16 %v1404
    %v2137 = vunpack.c.h.b16 %v1404
    %v2138 = vunpack.c.l.b16 %v1405
    %v2139 = vunpack.c.h.b16 %v1405
    %v2140 = vunpack.c.l.b16 %v1406
    %v2141 = vunpack.c.h.b16 %v1406
    %v2142 = vunpack.c.l.b16 %v1407
    %v2143 = vunpack.c.l.b16 %v1408
    %v2144 = vunpack.c.h.b16 %v1408
    %v2145 = vunpack.c.l.b16 %v1409
    %v2146 = vunpack.c.h.b16 %v1409
    %v2147 = vunpack.c.l.b16 %v1410
    %v2148 = vunpack.c.h.b16 %v1410
    %v2149 = vunpack.c.l.b16 %v1411
    %v2150 = vunpack.c.l.b16 %v1412
    %v2151 = vunpack.c.h.b16 %v1412
    %v2152 = vunpack.c.l.b16 %v1413
    %v2153 = vunpack.c.h.b16 %v1413
    %v2154 = vunpack.c.l.b16 %v1414
    %v2155 = vunpack.c.h.b16 %v1414
    %v2156 = vunpack.c.l.b16 %v1415
    %v2157 = vunpack.c.l.b16 %v1416
    %v2158 = vunpack.c.h.b16 %v1416
    %v2159 = vunpack.c.l.b16 %v1417
    %v2160 = vunpack.c.h.b16 %v1417
    %v2161 = vunpack.c.l.b16 %v1418
    %v2162 = vunpack.c.h.b16 %v1418
    %v2163 = vunpack.c.l.b16 %v1419
    %v2164 = vpack.c.b16 %v1723, %v1716
    %v2165 = vpack.c.b16 %v1724, %v1717
    %v2166 = vpack.c.b16 %v1725, %v1718
    %v2167 = vpack.c.b16 %v1726, %v1719
    %v2168 = vpack.c.b16 %v1727, %v1720
    %v2169 = vpack.c.b16 %v1728, %v1721
    %v2170 = vpack.c.b16 %v1729, %v1722
    %v2171 = vpack.c.b16 %v1737, %v1730
    %v2172 = vpack.c.b16 %v1738, %v1731
    %v2173 = vpack.c.b16 %v1739, %v1732
    %v2174 = vpack.c.b16 %v1740, %v1733
    %v2175 = vpack.c.b16 %v1741, %v1734
    %v2176 = vpack.c.b16 %v1742, %v1735
    %v2177 = vpack.c.b16 %v1743, %v1736
    %v2178 = vpack.c.b16 %v1751, %v1744
    %v2179 = vpack.c.b16 %v1752, %v1745
    %v2180 = vpack.c.b16 %v1753, %v1746
    %v2181 = vpack.c.b16 %v1754, %v1747
    %v2182 = vpack.c.b16 %v1755, %v1748
    %v2183 = vpack.c.b16 %v1756, %v1749
    %v2184 = vpack.c.b16 %v1757, %v1750
    %v2185 = vpack.c.b16 %v1765, %v1758
    %v2186 = vpack.c.b16 %v1766, %v1759
    %v2187 = vpack.c.b16 %v1767, %v1760
    %v2188 = vpack.c.b16 %v1768, %v1761
    %v2189 = vpack.c.b16 %v1769, %v1762
    %v2190 = vpack.c.b16 %v1770, %v1763
    %v2191 = vpack.c.b16 %v1771, %v1764
    %v2192 = vpack.c.b16 %v1779, %v1772
    %v2193 = vpack.c.b16 %v1780, %v1773
    %v2194 = vpack.c.b16 %v1781, %v1774
    %v2195 = vpack.c.b16 %v1782, %v1775
    %v2196 = vpack.c.b16 %v1783, %v1776
    %v2197 = vpack.c.b16 %v1784, %v1777
    %v2198 = vpack.c.b16 %v1785, %v1778
    %v2199 = vpack.c.b16 %v1793, %v1786
    %v2200 = vpack.c.b16 %v1794, %v1787
    %v2201 = vpack.c.b16 %v1795, %v1788
    %v2202 = vpack.c.b16 %v1796, %v1789
    %v2203 = vpack.c.b16 %v1797, %v1790
    %v2204 = vpack.c.b16 %v1798, %v1791
    %v2205 = vpack.c.b16 %v1799, %v1792
    %v2206 = vpack.c.b16 %v1807, %v1800
    %v2207 = vpack.c.b16 %v1808, %v1801
    %v2208 = vpack.c.b16 %v1809, %v1802
    %v2209 = vpack.c.b16 %v1810, %v1803
    %v2210 = vpack.c.b16 %v1811, %v1804
    %v2211 = vpack.c.b16 %v1812, %v1805
    %v2212 = vpack.c.b16 %v1813, %v1806
    %v2213 = vpack.c.b16 %v1821, %v1814
    %v2214 = vpack.c.b16 %v1822, %v1815
    %v2215 = vpack.c.b16 %v1823, %v1816
    %v2216 = vpack.c.b16 %v1824, %v1817
    %v2217 = vpack.c.b16 %v1825, %v1818
    %v2218 = vpack.c.b16 %v1826, %v1819
    %v2219 = vpack.c.b16 %v1827, %v1820
    %v2220 = vpack.c.b16 %v1835, %v1828
    %v2221 = vpack.c.b16 %v1836, %v1829
    %v2222 = vpack.c.b16 %v1837, %v1830
    %v2223 = vpack.c.b16 %v1838, %v1831
    %v2224 = vpack.c.b16 %v1839, %v1832
    %v2225 = vpack.c.b16 %v1840, %v1833
    %v2226 = vpack.c.b16 %v1841, %v1834
    %v2227 = vpack.c.b16 %v1849, %v1842
    %v2228 = vpack.c.b16 %v1850, %v1843
    %v2229 = vpack.c.b16 %v1851, %v1844
    %v2230 = vpack.c.b16 %v1852, %v1845
    %v2231 = vpack.c.b16 %v1853, %v1846
    %v2232 = vpack.c.b16 %v1854, %v1847
    %v2233 = vpack.c.b16 %v1855, %v1848
    %v2234 = vpack.c.b16 %v1863, %v1856
    %v2235 = vpack.c.b16 %v1864, %v1857
    %v2236 = vpack.c.b16 %v1865, %v1858
    %v2237 = vpack.c.b16 %v1866, %v1859
    %v2238 = vpack.c.b16 %v1867, %v1860
    %v2239 = vpack.c.b16 %v1868, %v1861
    %v2240 = vpack.c.b16 %v1869, %v1862
    %v2241 = vpack.c.b16 %v1877, %v1870
    %v2242 = vpack.c.b16 %v1878, %v1871
    %v2243 = vpack.c.b16 %v1879, %v1872
    %v2244 = vpack.c.b16 %v1880, %v1873
    %v2245 = vpack.c.b16 %v1881, %v1874
    %v2246 = vpack.c.b16 %v1882, %v1875
    %v2247 = vpack.c.b16 %v1883, %v1876
    %v2248 = vpack.c.b16 %v1891, %v1884
    %v2249 = vpack.c.b16 %v1892, %v1885
    %v2250 = vpack.c.b16 %v1893, %v1886
    %v2251 = vpack.c.b16 %v1894, %v1887
    %v2252 = vpack.c.b16 %v1895, %v1888
    %v2253 = vpack.c.b16 %v1896, %v1889
    %v2254 = vpack.c.b16 %v1897, %v1890
    %v2255 = vpack.c.b16 %v1905, %v1898
    %v2256 = vpack.c.b16 %v1906, %v1899
    %v2257 = vpack.c.b16 %v1907, %v1900
    %v2258 = vpack.c.b16 %v1908, %v1901
    %v2259 = vpack.c.b16 %v1909, %v1902
    %v2260 = vpack.c.b16 %v1910, %v1903
    %v2261 = vpack.c.b16 %v1911, %v1904
    %v2262 = vpack.c.b16 %v1919, %v1912
    %v2263 = vpack.c.b16 %v1920, %v1913
    %v2264 = vpack.c.b16 %v1921, %v1914
    %v2265 = vpack.c.b16 %v1922, %v1915
    %v2266 = vpack.c.b16 %v1923, %v1916
    %v2267 = vpack.c.b16 %v1924, %v1917
    %v2268 = vpack.c.b16 %v1925, %v1918
    %v2269 = vpack.c.b16 %v1933, %v1926
    %v2270 = vpack.c.b16 %v1934, %v1927
    %v2271 = vpack.c.b16 %v1935, %v1928
    %v2272 = vpack.c.b16 %v1936, %v1929
    %v2273 = vpack.c.b16 %v1937, %v1930
    %v2274 = vpack.c.b16 %v1938, %v1931
    %v2275 = vpack.c.b16 %v1939, %v1932
    %v2276 = vpack.c.b16 %v1947, %v1940
    %v2277 = vpack.c.b16 %v1948, %v1941
    %v2278 = vpack.c.b16 %v1949, %v1942
    %v2279 = vpack.c.b16 %v1950, %v1943
    %v2280 = vpack.c.b16 %v1951, %v1944
    %v2281 = vpack.c.b16 %v1952, %v1945
    %v2282 = vpack.c.b16 %v1953, %v1946
    %v2283 = vpack.c.b16 %v1961, %v1954
    %v2284 = vpack.c.b16 %v1962, %v1955
    %v2285 = vpack.c.b16 %v1963, %v1956
    %v2286 = vpack.c.b16 %v1964, %v1957
    %v2287 = vpack.c.b16 %v1965, %v1958
    %v2288 = vpack.c.b16 %v1966, %v1959
    %v2289 = vpack.c.b16 %v1967, %v1960
    %v2290 = vpack.c.b16 %v1975, %v1968
    %v2291 = vpack.c.b16 %v1976, %v1969
    %v2292 = vpack.c.b16 %v1977, %v1970
    %v2293 = vpack.c.b16 %v1978, %v1971
    %v2294 = vpack.c.b16 %v1979, %v1972
    %v2295 = vpack.c.b16 %v1980, %v1973
    %v2296 = vpack.c.b16 %v1981, %v1974
    %v2297 = vpack.c.b16 %v1989, %v1982
    %v2298 = vpack.c.b16 %v1990, %v1983
    %v2299 = vpack.c.b16 %v1991, %v1984
    %v2300 = vpack.c.b16 %v1992, %v1985
    %v2301 = vpack.c.b16 %v1993, %v1986
    %v2302 = vpack.c.b16 %v1994, %v1987
    %v2303 = vpack.c.b16 %v1995, %v1988
    %v2304 = vpack.c.b16 %v2003, %v1996
    %v2305 = vpack.c.b16 %v2004, %v1997
    %v2306 = vpack.c.b16 %v2005, %v1998
    %v2307 = vpack.c.b16 %v2006, %v1999
    %v2308 = vpack.c.b16 %v2007, %v2000
    %v2309 = vpack.c.b16 %v2008, %v2001
    %v2310 = vpack.c.b16 %v2009, %v2002
    %v2311 = vpack.c.b16 %v2017, %v2010
    %v2312 = vpack.c.b16 %v2018, %v2011
    %v2313 = vpack.c.b16 %v2019, %v2012
    %v2314 = vpack.c.b16 %v2020, %v2013
    %v2315 = vpack.c.b16 %v2021, %v2014
    %v2316 = vpack.c.b16 %v2022, %v2015
    %v2317 = vpack.c.b16 %v2023, %v2016
    %v2318 = vpack.c.b16 %v2031, %v2024
    %v2319 = vpack.c.b16 %v2032, %v2025
    %v2320 = vpack.c.b16 %v2033, %v2026
    %v2321 = vpack.c.b16 %v2034, %v2027
    %v2322 = vpack.c.b16 %v2035, %v2028
    %v2323 = vpack.c.b16 %v2036, %v2029
    %v2324 = vpack.c.b16 %v2037, %v2030
    %v2325 = vpack.c.b16 %v2045, %v2038
    %v2326 = vpack.c.b16 %v2046, %v2039
    %v2327 = vpack.c.b16 %v2047, %v2040
    %v2328 = vpack.c.b16 %v2048, %v2041
    %v2329 = vpack.c.b16 %v2049, %v2042
    %v2330 = vpack.c.b16 %v2050, %v2043
    %v2331 = vpack.c.b16 %v2051, %v2044
    %v2332 = vpack.c.b16 %v2059, %v2052
    %v2333 = vpack.c.b16 %v2060, %v2053
    %v2334 = vpack.c.b16 %v2061, %v2054
    %v2335 = vpack.c.b16 %v2062, %v2055
    %v2336 = vpack.c.b16 %v2063, %v2056
    %v2337 = vpack.c.b16 %v2064, %v2057
    %v2338 = vpack.c.b16 %v2065, %v2058
    %v2339 = vpack.c.b16 %v2073, %v2066
    %v2340 = vpack.c.b16 %v2074, %v2067
    %v2341 = vpack.c.b16 %v2075, %v2068
    %v2342 = vpack.c.b16 %v2076, %v2069
    %v2343 = vpack.c.b16 %v2077, %v2070
    %v2344 = vpack.c.b16 %v2078, %v2071
    %v2345 = vpack.c.b16 %v2079, %v2072
    %v2346 = vpack.c.b16 %v2087, %v2080
    %v2347 = vpack.c.b16 %v2088, %v2081
    %v2348 = vpack.c.b16 %v2089, %v2082
    %v2349 = vpack.c.b16 %v2090, %v2083
    %v2350 = vpack.c.b16 %v2091, %v2084
    %v2351 = vpack.c.b16 %v2092, %v2085
    %v2352 = vpack.c.b16 %v2093, %v2086
    %v2353 = vpack.c.b16 %v2101, %v2094
    %v2354 = vpack.c.b16 %v2102, %v2095
    %v2355 = vpack.c.b16 %v2103, %v2096
    %v2356 = vpack.c.b16 %v2104, %v2097
    %v2357 = vpack.c.b16 %v2105, %v2098
    %v2358 = vpack.c.b16 %v2106, %v2099
    %v2359 = vpack.c.b16 %v2107, %v2100
    %v2360 = vpack.c.b16 %v2115, %v2108
    %v2361 = vpack.c.b16 %v2116, %v2109
    %v2362 = vpack.c.b16 %v2117, %v2110
    %v2363 = vpack.c.b16 %v2118, %v2111
    %v2364 = vpack.c.b16 %v2119, %v2112
    %v2365 = vpack.c.b16 %v2120, %v2113
    %v2366 = vpack.c.b16 %v2121, %v2114
    %v2367 = vpack.c.b16 %v2129, %v2122
    %v2368 = vpack.c.b16 %v2130, %v2123
    %v2369 = vpack.c.b16 %v2131, %v2124
    %v2370 = vpack.c.b16 %v2132, %v2125
    %v2371 = vpack.c.b16 %v2133, %v2126
    %v2372 = vpack.c.b16 %v2134, %v2127
    %v2373 = vpack.c.b16 %v2135, %v2128
    %v2374 = vpack.c.b16 %v2143, %v2136
    %v2375 = vpack.c.b16 %v2144, %v2137
    %v2376 = vpack.c.b16 %v2145, %v2138
    %v2377 = vpack.c.b16 %v2146, %v2139
    %v2378 = vpack.c.b16 %v2147, %v2140
    %v2379 = vpack.c.b16 %v2148, %v2141
    %v2380 = vpack.c.b16 %v2149, %v2142
    %v2381 = vpack.c.b16 %v2157, %v2150
    %v2382 = vpack.c.b16 %v2158, %v2151
    %v2383 = vpack.c.b16 %v2159, %v2152
    %v2384 = vpack.c.b16 %v2160, %v2153
    %v2385 = vpack.c.b16 %v2161, %v2154
    %v2386 = vpack.c.b16 %v2162, %v2155
    %v2387 = vpack.c.b16 %v2163, %v2156
    %2612 = vmatprep.subr.bf16.mxu0 %v2165
    %2613 = vmatpush1.bf16.msra.mxu0 %v2164
    %2614 = vmatprep.subr.bf16.mxu0 %v2172
    %2615 = vmatpush1.bf16.msra.mxu0 %v2171
    %2616 = vmatprep.subr.bf16.mxu0 %v2179
    %2617 = vmatpush1.bf16.msra.mxu0 %v2178
    %2618 = vmatprep.subr.bf16.mxu0 %v2186
    %2619 = vmatpush1.bf16.msra.mxu0 %v2185
    %2620 = vmatprep.subr.bf16.mxu0 %v2193
    %2621 = vmatpush1.bf16.msra.mxu0 %v2192
    %2622 = vmatprep.subr.bf16.mxu0 %v2200
    %2623 = vmatpush1.bf16.msra.mxu0 %v2199
    %2624 = vmatprep.subr.bf16.mxu0 %v2207
    %2625 = vmatpush1.bf16.msra.mxu0 %v2206
    %2626 = vmatprep.subr.bf16.mxu0 %v2214
    %2627 = vmatpush1.bf16.msra.mxu0 %v2213
    %2628 = vmatprep.subr.bf16.mxu0 %v2221
    %2629 = vmatpush1.bf16.msra.mxu0 %v2220
    %2630 = vmatprep.subr.bf16.mxu0 %v2228
    %2631 = vmatpush1.bf16.msra.mxu0 %v2227
    %2632 = vmatprep.subr.bf16.mxu0 %v2235
    %2633 = vmatpush1.bf16.msra.mxu0 %v2234
    %2634 = vmatprep.subr.bf16.mxu0 %v2242
    %2635 = vmatpush1.bf16.msra.mxu0 %v2241
    %2636 = vmatprep.subr.bf16.mxu0 %v2249
    %2637 = vmatpush1.bf16.msra.mxu0 %v2248
    %2638 = vmatprep.subr.bf16.mxu0 %v2256
    %2639 = vmatpush1.bf16.msra.mxu0 %v2255
    %2640 = vmatprep.subr.bf16.mxu0 %v2263
    %2641 = vmatpush1.bf16.msra.mxu0 %v2262
    %2642 = vmatprep.subr.bf16.mxu0 %v2270
    %2643 = vmatpush1.bf16.msra.mxu0 %v2269
    %2644 = vmatprep.mubr.bf16.mxu0 %v1161
    %2645 = vmatmul.mubr.bf16.gmra.mrb[0].mxu0 %v1160
    %v2646 = vpop.f32.mrb[0].mxu0
    %v2647 = vadd.f32 %v1428, %v2646
    %v2648 = vpop.f32.mrb[0].mxu0
    %v2649 = vadd.f32 %v1432, %v2648
    %v2650 = vpop.f32.mrb[0].mxu0
    %v2651 = vadd.f32 %v1428, %v2650
    %v2652 = vpop.f32.mrb[0].mxu0
    %v2653 = vadd.f32 %v1432, %v2652
    %2654 = vdwg.mxu0
    %2655 = vmatprep.subr.bf16.mxu0 %v2277
    %2656 = vmatpush1.bf16.msra.mxu0 %v2276
    %2657 = vmatprep.subr.bf16.mxu0 %v2284
    %2658 = vmatpush1.bf16.msra.mxu0 %v2283
    %2659 = vmatprep.subr.bf16.mxu0 %v2291
    %2660 = vmatpush1.bf16.msra.mxu0 %v2290
    %2661 = vmatprep.subr.bf16.mxu0 %v2298
    %2662 = vmatpush1.bf16.msra.mxu0 %v2297
    %2663 = vmatprep.subr.bf16.mxu0 %v2305
    %2664 = vmatpush1.bf16.msra.mxu0 %v2304
    %2665 = vmatprep.subr.bf16.mxu0 %v2312
    %2666 = vmatpush1.bf16.msra.mxu0 %v2311
    %2667 = vmatprep.subr.bf16.mxu0 %v2319
    %2668 = vmatpush1.bf16.msra.mxu0 %v2318
    %2669 = vmatprep.subr.bf16.mxu0 %v2326
    %2670 = vmatpush1.bf16.msra.mxu0 %v2325
    %2671 = vmatprep.subr.bf16.mxu0 %v2333
    %2672 = vmatpush1.bf16.msra.mxu0 %v2332
    %2673 = vmatprep.subr.bf16.mxu0 %v2340
    %2674 = vmatpush1.bf16.msra.mxu0 %v2339
    %2675 = vmatprep.subr.bf16.mxu0 %v2347
    %2676 = vmatpush1.bf16.msra.mxu0 %v2346
    %2677 = vmatprep.subr.bf16.mxu0 %v2354
    %2678 = vmatpush1.bf16.msra.mxu0 %v2353
    %2679 = vmatprep.subr.bf16.mxu0 %v2361
    %2680 = vmatpush1.bf16.msra.mxu0 %v2360
    %2681 = vmatprep.subr.bf16.mxu0 %v2368
    %2682 = vmatpush1.bf16.msra.mxu0 %v2367
    %2683 = vmatprep.subr.bf16.mxu0 %v2375
    %2684 = vmatpush1.bf16.msra.mxu0 %v2374
    %2685 = vmatprep.subr.bf16.mxu0 %v2382
    %2686 = vmatpush1.bf16.msra.mxu0 %v2381
    %2687 = vmatprep.mubr.bf16.mxu0 %v1163
    %2688 = vmatmul.mubr.bf16.gmra.mrb[0].mxu0 %v1162
    %v2689 = vpop.f32.mrb[0].mxu0
    %v2690 = vadd.f32 %v2647, %v2689
    %v2691 = vpop.f32.mrb[0].mxu0
    %v2692 = vadd.f32 %v2649, %v2691
    %v2693 = vpop.f32.mrb[0].mxu0
    %v2694 = vadd.f32 %v2651, %v2693
    %v2695 = vpop.f32.mrb[0].mxu0
    %v2696 = vadd.f32 %v2653, %v2695
    %2697 = vdwg.mxu0
    %2698 = vmatprep.subr.bf16.mxu0 %v2167
    %2699 = vmatpush1.bf16.msra.mxu0 %v2166
    %2700 = vmatprep.subr.bf16.mxu0 %v2174
    %2701 = vmatpush1.bf16.msra.mxu0 %v2173
    %2702 = vmatprep.subr.bf16.mxu0 %v2181
    %2703 = vmatpush1.bf16.msra.mxu0 %v2180
    %2704 = vmatprep.subr.bf16.mxu0 %v2188
    %2705 = vmatpush1.bf16.msra.mxu0 %v2187
    %2706 = vmatprep.subr.bf16.mxu0 %v2195
    %2707 = vmatpush1.bf16.msra.mxu0 %v2194
    %2708 = vmatprep.subr.bf16.mxu0 %v2202
    %2709 = vmatpush1.bf16.msra.mxu0 %v2201
    %2710 = vmatprep.subr.bf16.mxu0 %v2209
    %2711 = vmatpush1.bf16.msra.mxu0 %v2208
    %2712 = vmatprep.subr.bf16.mxu0 %v2216
    %2713 = vmatpush1.bf16.msra.mxu0 %v2215
    %2714 = vmatprep.subr.bf16.mxu0 %v2223
    %2715 = vmatpush1.bf16.msra.mxu0 %v2222
    %2716 = vmatprep.subr.bf16.mxu0 %v2230
    %2717 = vmatpush1.bf16.msra.mxu0 %v2229
    %2718 = vmatprep.subr.bf16.mxu0 %v2237
    %2719 = vmatpush1.bf16.msra.mxu0 %v2236
    %2720 = vmatprep.subr.bf16.mxu0 %v2244
    %2721 = vmatpush1.bf16.msra.mxu0 %v2243
    %2722 = vmatprep.subr.bf16.mxu0 %v2251
    %2723 = vmatpush1.bf16.msra.mxu0 %v2250
    %2724 = vmatprep.subr.bf16.mxu0 %v2258
    %2725 = vmatpush1.bf16.msra.mxu0 %v2257
    %2726 = vmatprep.subr.bf16.mxu0 %v2265
    %2727 = vmatpush1.bf16.msra.mxu0 %v2264
    %2728 = vmatprep.subr.bf16.mxu0 %v2272
    %2729 = vmatpush1.bf16.msra.mxu0 %v2271
    %2730 = vmatprep.mubr.bf16.mxu0 %v1161
    %2731 = vmatmul.mubr.bf16.gmra.mrb[0].mxu0 %v1160
    %v2732 = vpop.f32.mrb[0].mxu0
    %v2733 = vadd.f32 %v1436, %v2732
    %v2734 = vpop.f32.mrb[0].mxu0
    %v2735 = vadd.f32 %v1440, %v2734
    %v2736 = vpop.f32.mrb[0].mxu0
    %v2737 = vadd.f32 %v1436, %v2736
    %v2738 = vpop.f32.mrb[0].mxu0
    %v2739 = vadd.f32 %v1440, %v2738
    %2740 = vdwg.mxu0
    %2741 = vmatprep.subr.bf16.mxu0 %v2279
    %2742 = vmatpush1.bf16.msra.mxu0 %v2278
    %2743 = vmatprep.subr.bf16.mxu0 %v2286
    %2744 = vmatpush1.bf16.msra.mxu0 %v2285
    %2745 = vmatprep.subr.bf16.mxu0 %v2293
    %2746 = vmatpush1.bf16.msra.mxu0 %v2292
    %2747 = vmatprep.subr.bf16.mxu0 %v2300
    %2748 = vmatpush1.bf16.msra.mxu0 %v2299
    %2749 = vmatprep.subr.bf16.mxu0 %v2307
    %2750 = vmatpush1.bf16.msra.mxu0 %v2306
    %2751 = vmatprep.subr.bf16.mxu0 %v2314
    %2752 = vmatpush1.bf16.msra.mxu0 %v2313
    %2753 = vmatprep.subr.bf16.mxu0 %v2321
    %2754 = vmatpush1.bf16.msra.mxu0 %v2320
    %2755 = vmatprep.subr.bf16.mxu0 %v2328
    %2756 = vmatpush1.bf16.msra.mxu0 %v2327
    %2757 = vmatprep.subr.bf16.mxu0 %v2335
    %2758 = vmatpush1.bf16.msra.mxu0 %v2334
    %2759 = vmatprep.subr.bf16.mxu0 %v2342
    %2760 = vmatpush1.bf16.msra.mxu0 %v2341
    %2761 = vmatprep.subr.bf16.mxu0 %v2349
    %2762 = vmatpush1.bf16.msra.mxu0 %v2348
    %2763 = vmatprep.subr.bf16.mxu0 %v2356
    %2764 = vmatpush1.bf16.msra.mxu0 %v2355
    %2765 = vmatprep.subr.bf16.mxu0 %v2363
    %2766 = vmatpush1.bf16.msra.mxu0 %v2362
    %2767 = vmatprep.subr.bf16.mxu0 %v2370
    %2768 = vmatpush1.bf16.msra.mxu0 %v2369
    %2769 = vmatprep.subr.bf16.mxu0 %v2377
    %2770 = vmatpush1.bf16.msra.mxu0 %v2376
    %2771 = vmatprep.subr.bf16.mxu0 %v2384
    %2772 = vmatpush1.bf16.msra.mxu0 %v2383
    %2773 = vmatprep.mubr.bf16.mxu0 %v1163
    %2774 = vmatmul.mubr.bf16.gmra.mrb[0].mxu0 %v1162
    %v2775 = vpop.f32.mrb[0].mxu0
    %v2776 = vadd.f32 %v2733, %v2775
    %v2777 = vpop.f32.mrb[0].mxu0
    %v2778 = vadd.f32 %v2735, %v2777
    %v2779 = vpop.f32.mrb[0].mxu0
    %v2780 = vadd.f32 %v2737, %v2779
    %v2781 = vpop.f32.mrb[0].mxu0
    %v2782 = vadd.f32 %v2739, %v2781
    %2783 = vdwg.mxu0
    %2784 = vmatprep.subr.bf16.mxu0 %v2169
    %2785 = vmatpush1.bf16.msra.mxu0 %v2168
    %2786 = vmatprep.subr.bf16.mxu0 %v2176
    %2787 = vmatpush1.bf16.msra.mxu0 %v2175
    %2788 = vmatprep.subr.bf16.mxu0 %v2183
    %2789 = vmatpush1.bf16.msra.mxu0 %v2182
    %2790 = vmatprep.subr.bf16.mxu0 %v2190
    %2791 = vmatpush1.bf16.msra.mxu0 %v2189
    %2792 = vmatprep.subr.bf16.mxu0 %v2197
    %2793 = vmatpush1.bf16.msra.mxu0 %v2196
    %2794 = vmatprep.subr.bf16.mxu0 %v2204
    %2795 = vmatpush1.bf16.msra.mxu0 %v2203
    %2796 = vmatprep.subr.bf16.mxu0 %v2211
    %2797 = vmatpush1.bf16.msra.mxu0 %v2210
    %2798 = vmatprep.subr.bf16.mxu0 %v2218
    %2799 = vmatpush1.bf16.msra.mxu0 %v2217
    %2800 = vmatprep.subr.bf16.mxu0 %v2225
    %2801 = vmatpush1.bf16.msra.mxu0 %v2224
    %2802 = vmatprep.subr.bf16.mxu0 %v2232
    %2803 = vmatpush1.bf16.msra.mxu0 %v2231
    %2804 = vmatprep.subr.bf16.mxu0 %v2239
    %2805 = vmatpush1.bf16.msra.mxu0 %v2238
    %2806 = vmatprep.subr.bf16.mxu0 %v2246
    %2807 = vmatpush1.bf16.msra.mxu0 %v2245
    %2808 = vmatprep.subr.bf16.mxu0 %v2253
    %2809 = vmatpush1.bf16.msra.mxu0 %v2252
    %2810 = vmatprep.subr.bf16.mxu0 %v2260
    %2811 = vmatpush1.bf16.msra.mxu0 %v2259
    %2812 = vmatprep.subr.bf16.mxu0 %v2267
    %2813 = vmatpush1.bf16.msra.mxu0 %v2266
    %2814 = vmatprep.subr.bf16.mxu0 %v2274
    %2815 = vmatpush1.bf16.msra.mxu0 %v2273
    %2816 = vmatprep.mubr.bf16.mxu0 %v1161
    %2817 = vmatmul.mubr.bf16.gmra.mrb[0].mxu0 %v1160
    %v2818 = vpop.f32.mrb[0].mxu0
    %v2819 = vadd.f32 %v1444, %v2818
    %v2820 = vpop.f32.mrb[0].mxu0
    %v2821 = vadd.f32 %v1448, %v2820
    %v2822 = vpop.f32.mrb[0].mxu0
    %v2823 = vadd.f32 %v1444, %v2822
    %v2824 = vpop.f32.mrb[0].mxu0
    %v2825 = vadd.f32 %v1448, %v2824
    %2826 = vdwg.mxu0
    %2827 = vmatprep.subr.bf16.mxu0 %v2281
    %2828 = vmatpush1.bf16.msra.mxu0 %v2280
    %2829 = vmatprep.subr.bf16.mxu0 %v2288
    %2830 = vmatpush1.bf16.msra.mxu0 %v2287
    %2831 = vmatprep.subr.bf16.mxu0 %v2295
    %2832 = vmatpush1.bf16.msra.mxu0 %v2294
    %2833 = vmatprep.subr.bf16.mxu0 %v2302
    %2834 = vmatpush1.bf16.msra.mxu0 %v2301
    %2835 = vmatprep.subr.bf16.mxu0 %v2309
    %2836 = vmatpush1.bf16.msra.mxu0 %v2308
    %2837 = vmatprep.subr.bf16.mxu0 %v2316
    %2838 = vmatpush1.bf16.msra.mxu0 %v2315
    %2839 = vmatprep.subr.bf16.mxu0 %v2323
    %2840 = vmatpush1.bf16.msra.mxu0 %v2322
    %2841 = vmatprep.subr.bf16.mxu0 %v2330
    %2842 = vmatpush1.bf16.msra.mxu0 %v2329
    %2843 = vmatprep.subr.bf16.mxu0 %v2337
    %2844 = vmatpush1.bf16.msra.mxu0 %v2336
    %2845 = vmatprep.subr.bf16.mxu0 %v2344
    %2846 = vmatpush1.bf16.msra.mxu0 %v2343
    %2847 = vmatprep.subr.bf16.mxu0 %v2351
    %2848 = vmatpush1.bf16.msra.mxu0 %v2350
    %2849 = vmatprep.subr.bf16.mxu0 %v2358
    %2850 = vmatpush1.bf16.msra.mxu0 %v2357
    %2851 = vmatprep.subr.bf16.mxu0 %v2365
    %2852 = vmatpush1.bf16.msra.mxu0 %v2364
    %2853 = vmatprep.subr.bf16.mxu0 %v2372
    %2854 = vmatpush1.bf16.msra.mxu0 %v2371
    %2855 = vmatprep.subr.bf16.mxu0 %v2379
    %2856 = vmatpush1.bf16.msra.mxu0 %v2378
    %2857 = vmatprep.subr.bf16.mxu0 %v2386
    %2858 = vmatpush1.bf16.msra.mxu0 %v2385
    %2859 = vmatprep.mubr.bf16.mxu0 %v1163
    %2860 = vmatmul.mubr.bf16.gmra.mrb[0].mxu0 %v1162
    %v2861 = vpop.f32.mrb[0].mxu0
    %v2862 = vadd.f32 %v2819, %v2861
    %v2863 = vpop.f32.mrb[0].mxu0
    %v2864 = vadd.f32 %v2821, %v2863
    %v2865 = vpop.f32.mrb[0].mxu0
    %v2866 = vadd.f32 %v2823, %v2865
    %v2867 = vpop.f32.mrb[0].mxu0
    %v2868 = vadd.f32 %v2825, %v2867
    %2869 = vdwg.mxu0
    %2870 = vmatprep.subr.bf16.mxu0 0
    %2871 = vmatpush1.bf16.msra.mxu0 %v2170
    %2872 = vmatprep.subr.bf16.mxu0 0
    %2873 = vmatpush1.bf16.msra.mxu0 %v2177
    %2874 = vmatprep.subr.bf16.mxu0 0
    %2875 = vmatpush1.bf16.msra.mxu0 %v2184
    %2876 = vmatprep.subr.bf16.mxu0 0
    %2877 = vmatpush1.bf16.msra.mxu0 %v2191
    %2878 = vmatprep.subr.bf16.mxu0 0
    %2879 = vmatpush1.bf16.msra.mxu0 %v2198
    %2880 = vmatprep.subr.bf16.mxu0 0
    %2881 = vmatpush1.bf16.msra.mxu0 %v2205
    %2882 = vmatprep.subr.bf16.mxu0 0
    %2883 = vmatpush1.bf16.msra.mxu0 %v2212
    %2884 = vmatprep.subr.bf16.mxu0 0
    %2885 = vmatpush1.bf16.msra.mxu0 %v2219
    %2886 = vmatprep.subr.bf16.mxu0 0
    %2887 = vmatpush1.bf16.msra.mxu0 %v2226
    %2888 = vmatprep.subr.bf16.mxu0 0
    %2889 = vmatpush1.bf16.msra.mxu0 %v2233
    %2890 = vmatprep.subr.bf16.mxu0 0
    %2891 = vmatpush1.bf16.msra.mxu0 %v2240
    %2892 = vmatprep.subr.bf16.mxu0 0
    %2893 = vmatpush1.bf16.msra.mxu0 %v2247
    %2894 = vmatprep.subr.bf16.mxu0 0
    %2895 = vmatpush1.bf16.msra.mxu0 %v2254
    %2896 = vmatprep.subr.bf16.mxu0 0
    %2897 = vmatpush1.bf16.msra.mxu0 %v2261
    %2898 = vmatprep.subr.bf16.mxu0 0
    %2899 = vmatpush1.bf16.msra.mxu0 %v2268
    %2900 = vmatprep.subr.bf16.mxu0 0
    %2901 = vmatpush1.bf16.msra.mxu0 %v2275
    %2902 = vmatprep.mubr.bf16.mxu0 %v1161
    %2903 = vmatmul.mubr.bf16.gmra.mrb[0].mxu0 %v1160
    %v2904 = vpop.f32.mrb[0].mxu0
    %v2905 = vadd.f32 %v1452, %v2904
    %v2906 = vpop.f32.mrb[0].mxu0
    %v2907 = vpop.f32.mrb[0].mxu0
    %v2908 = vadd.f32 %v1452, %v2907
    %v2909 = vpop.f32.mrb[0].mxu0
    %2910 = vdwg.mxu0
    %2911 = vmatprep.subr.bf16.mxu0 0
    %2912 = vmatpush1.bf16.msra.mxu0 %v2282
    %2913 = vmatprep.subr.bf16.mxu0 0
    %2914 = vmatpush1.bf16.msra.mxu0 %v2289
    %2915 = vmatprep.subr.bf16.mxu0 0
    %2916 = vmatpush1.bf16.msra.mxu0 %v2296
    %2917 = vmatprep.subr.bf16.mxu0 0
    %2918 = vmatpush1.bf16.msra.mxu0 %v2303
    %2919 = vmatprep.subr.bf16.mxu0 0
    %2920 = vmatpush1.bf16.msra.mxu0 %v2310
    %2921 = vmatprep.subr.bf16.mxu0 0
    %2922 = vmatpush1.bf16.msra.mxu0 %v2317
    %2923 = vmatprep.subr.bf16.mxu0 0
    %2924 = vmatpush1.bf16.msra.mxu0 %v2324
    %2925 = vmatprep.subr.bf16.mxu0 0
    %2926 = vmatpush1.bf16.msra.mxu0 %v2331
    %2927 = vmatprep.subr.bf16.mxu0 0
    %2928 = vmatpush1.bf16.msra.mxu0 %v2338
    %2929 = vmatprep.subr.bf16.mxu0 0
    %2930 = vmatpush1.bf16.msra.mxu0 %v2345
    %2931 = vmatprep.subr.bf16.mxu0 0
    %2932 = vmatpush1.bf16.msra.mxu0 %v2352
    %2933 = vmatprep.subr.bf16.mxu0 0
    %2934 = vmatpush1.bf16.msra.mxu0 %v2359
    %2935 = vmatprep.subr.bf16.mxu0 0
    %2936 = vmatpush1.bf16.msra.mxu0 %v2366
    %2937 = vmatprep.subr.bf16.mxu0 0
    %2938 = vmatpush1.bf16.msra.mxu0 %v2373
    %2939 = vmatprep.subr.bf16.mxu0 0
    %2940 = vmatpush1.bf16.msra.mxu0 %v2380
    %2941 = vmatprep.subr.bf16.mxu0 0
    %2942 = vmatpush1.bf16.msra.mxu0 %v2387
    %2943 = vmatprep.mubr.bf16.mxu0 %v1163
    %2944 = vmatmul.mubr.bf16.gmra.mrb[0].mxu0 %v1162
    %v2945 = vpop.f32.mrb[0].mxu0
    %v2946 = vadd.f32 %v2905, %v2945
    %v2947 = vpop.f32.mrb[0].mxu0
    %v2948 = vpop.f32.mrb[0].mxu0
    %v2949 = vadd.f32 %v2908, %v2948
    %v2950 = vpop.f32.mrb[0].mxu0
    %2951 = vdwg.mxu0
    %v2952 = vxor.u32 %v2690, 2147483648
    %v2953 = vxor.u32 %v2692, 2147483648
    %v2954 = vxor.u32 %v2776, 2147483648
    %v2955 = vxor.u32 %v2778, 2147483648
    %v2956 = vxor.u32 %v2862, 2147483648
    %v2957 = vxor.u32 %v2864, 2147483648
    %v2958 = vxor.u32 %v2946, 2147483648
    %v2959 = vxor.u32 %v2694, 2147483648
    %v2960 = vxor.u32 %v2696, 2147483648
    %v2961 = vxor.u32 %v2780, 2147483648
    %v2962 = vxor.u32 %v2782, 2147483648
    %v2963 = vxor.u32 %v2866, 2147483648
    %v2964 = vxor.u32 %v2868, 2147483648
    %v2965 = vxor.u32 %v2949, 2147483648
    %v2966 = vmul.f32 %v2952, 1.442695
    %v2967 = vpow.pop %v2966
    %v2968 = vmul.f32 %v2953, 1.442695
    %v2969 = vpow.pop %v2968
    %v2970 = vmul.f32 %v2954, 1.442695
    %v2971 = vpow.pop %v2970
    %v2972 = vmul.f32 %v2955, 1.442695
    %v2973 = vpow.pop %v2972
    %v2974 = vmul.f32 %v2956, 1.442695
    %v2975 = vpow.pop %v2974
    %v2976 = vmul.f32 %v2957, 1.442695
    %v2977 = vpow.pop %v2976
    %v2978 = vmul.f32 %v2958, 1.442695
    %v2979 = vpow.pop %v2978
    %v2980 = vmul.f32 %v2959, 1.442695
    %v2981 = vpow.pop %v2980
    %v2982 = vmul.f32 %v2960, 1.442695
    %v2983 = vpow.pop %v2982
    %v2984 = vmul.f32 %v2961, 1.442695
    %v2985 = vpow.pop %v2984
    %v2986 = vmul.f32 %v2962, 1.442695
    %v2987 = vpow.pop %v2986
    %v2988 = vmul.f32 %v2963, 1.442695
    %v2989 = vpow.pop %v2988
    %v2990 = vmul.f32 %v2964, 1.442695
    %v2991 = vpow.pop %v2990
    %v2992 = vmul.f32 %v2965, 1.442695
    %v2993 = vpow.pop %v2992
    %v2994 = vadd.f32 %v2967, 1.0
    %v2995 = vadd.f32 %v2969, 1.0
    %v2996 = vadd.f32 %v2971, 1.0
    %v2997 = vadd.f32 %v2973, 1.0
    %v2998 = vadd.f32 %v2975, 1.0
    %v2999 = vadd.f32 %v2977, 1.0
    %v3000 = vadd.f32 %v2979, 1.0
    %v3001 = vadd.f32 %v2981, 1.0
    %v3002 = vadd.f32 %v2983, 1.0
    %v3003 = vadd.f32 %v2985, 1.0
    %v3004 = vadd.f32 %v2987, 1.0
    %v3005 = vadd.f32 %v2989, 1.0
    %v3006 = vadd.f32 %v2991, 1.0
    %v3007 = vadd.f32 %v2993, 1.0
    %v3008 = vrcp.pop %v2994
    %v3009 = vmul.f32 1.0, %v3008
    %v3010 = vrcp.pop %v2995
    %v3011 = vmul.f32 1.0, %v3010
    %v3012 = vrcp.pop %v2996
    %v3013 = vmul.f32 1.0, %v3012
    %v3014 = vrcp.pop %v2997
    %v3015 = vmul.f32 1.0, %v3014
    %v3016 = vrcp.pop %v2998
    %v3017 = vmul.f32 1.0, %v3016
    %v3018 = vrcp.pop %v2999
    %v3019 = vmul.f32 1.0, %v3018
    %v3020 = vrcp.pop %v3000
    %v3021 = vmul.f32 1.0, %v3020
    %v3022 = vrcp.pop %v3001
    %v3023 = vmul.f32 1.0, %v3022
    %v3024 = vrcp.pop %v3002
    %v3025 = vmul.f32 1.0, %v3024
    %v3026 = vrcp.pop %v3003
    %v3027 = vmul.f32 1.0, %v3026
    %v3028 = vrcp.pop %v3004
    %v3029 = vmul.f32 1.0, %v3028
    %v3030 = vrcp.pop %v3005
    %v3031 = vmul.f32 1.0, %v3030
    %v3032 = vrcp.pop %v3006
    %v3033 = vmul.f32 1.0, %v3032
    %v3034 = vrcp.pop %v3007
    %v3035 = vmul.f32 1.0, %v3034
    %3036 = vst [vmem:[%s4] sm:$0xff] %v3009
    %3037 = vst [vmem:[%s4 + $0x8] sm:$0xff] %v3011
    %3038 = vst [vmem:[%s4 + $0x10] sm:$0xff] %v3013
    %3039 = vst [vmem:[%s4 + $0x18] sm:$0xff] %v3015
    %3040 = vst [vmem:[%s4 + $0x20] sm:$0xff] %v3017
    %3041 = vst [vmem:[%s4 + $0x28] sm:$0xff] %v3019
    %3042 = vst [vmem:[%s4 + $0x30] sm:$0xff] %v3021
    %3043 = vst [vmem:[%s4 + $0x38] sm:$0xff] %v3023
    %3044 = vst [vmem:[%s4 + $0x40] sm:$0xff] %v3025
    %3045 = vst [vmem:[%s4 + $0x48] sm:$0xff] %v3027
    %3046 = vst [vmem:[%s4 + $0x50] sm:$0xff] %v3029
    %3047 = vst [vmem:[%s4 + $0x58] sm:$0xff] %v3031
    %3048 = vst [vmem:[%s4 + $0x60] sm:$0xff] %v3033
    %3049 = vst [vmem:[%s4 + $0x68] sm:$0xff] %v3035
    // Predicated region
    $region30: #{decoder_forward.1} parent=1 // pred_check
      _
    $region31: #{decoder_forward.1} parent=1 // pred_check_branch
      %3051 = sbr.rel (0) target = $region33
    $region32: #{decoder_forward.1} parent=1 // pred_region
      _
    $region33: #{decoder_forward.1} parent=1 // pred_fallthru
      _
    // Predicated region
    $region34: #{decoder_forward.1} parent=1 // pred_check
      _
    $region35: #{decoder_forward.1} parent=1 // pred_check_branch
      %3053 = sbr.rel (0) target = $region37
    $region36: #{decoder_forward.1} parent=1 // pred_region
      _
    $region37: #{decoder_forward.1} parent=1 // pred_fallthru
      _
    %3054 = vsyncpa [#allocation3], 1
    %3055 = vsyncpa [#allocation5], 1

</llo_original>
